<compile_context>
chip_gen: v7x
topology: tpu7x:2x2x1
jax: 0.10.0
libtpu: 0.0.40
codegen_flags: <defaults>
</compile_context>

<pallas_src>
import functools

import jax
import jax.numpy as jnp
from jax import lax
from jax.experimental import pallas as pl
from jax.experimental.pallas import tpu as pltpu


def _round_up(v, m):
    return ((v + m - 1) // m) * m


def _lstm_encoder_kernel(x_ref, wih_ref, whh_ref, b_ref, wl_ref, bl_ref,
                         out_ref, h_sc, c_sc, gx_sc, *, hidden_pad, time_chunk):
    """Grid = (batch_tiles [parallel], time_chunks [arbitrary]).

    x_ref  : (Tc, Bt, Dp)   time-chunk of the (time-major, padded) input, bf16/f32
    wih_ref: (Dp, 4Hp)      W_ih^T, gate blocks at lane-aligned offsets k*Hp
    whh_ref: (Hp, 4Hp)      W_hh^T
    b_ref  : (1, 4Hp)       b_ih + b_hh (f32)
    wl_ref : (Hp, Op)       linear_1.weight^T
    bl_ref : (1, Op)        linear_1.bias (f32)
    out_ref: (Bt, Op)       final output tile (written on last time chunk only)
    h_sc, c_sc: (Bt, Hp)    f32 recurrent state, VMEM-resident across the grid
    gx_sc  : (Tc*Bt, 4Hp)   f32 hoisted input projection for the current chunk
    """
    Hp = hidden_pad
    Tc = time_chunk
    Bt = h_sc.shape[0]
    t_blk = pl.program_id(1)

    @pl.when(t_blk == 0)
    def _():
        h_sc[...] = jnp.zeros_like(h_sc)
        c_sc[...] = jnp.zeros_like(c_sc)

    # ---- Phase 1: hoisted input projection for the whole chunk.
    # One well-shaped MXU matmul instead of Tc tiny (B, D) @ (D, 4H) matmuls.
    x_chunk = x_ref[...].reshape(Tc * Bt, x_ref.shape[2])          # (Tc*Bt, Dp)
    gx_sc[...] = (
        jnp.dot(x_chunk, wih_ref[...], preferred_element_type=jnp.float32)
        + b_ref[...]
    )                                                              # f32

    whh = whh_ref[...]                                             # (Hp, 4Hp)

    # ---- Phase 2: the serial recurrence (one h @ W_hh matmul per step).
    # Gate slices are lane-aligned: each gate occupies columns [k*Hp, (k+1)*Hp).
    def step(t, carry):
        h, c = carry                                               # f32 (Bt, Hp)
        gates = gx_sc[pl.ds(t * Bt, Bt), :] + jnp.dot(
            h.astype(whh.dtype), whh, preferred_element_type=jnp.float32)
        i_g = jax.nn.sigmoid(gates[:, 0 * Hp:1 * Hp])
        f_g = jax.nn.sigmoid(gates[:, 1 * Hp:2 * Hp])
        g_g = jnp.tanh(gates[:, 2 * Hp:3 * Hp])
        o_g = jax.nn.sigmoid(gates[:, 3 * Hp:4 * Hp])
        c_new = f_g * c + i_g * g_g
        h_new = o_g * jnp.tanh(c_new)
        return h_new, c_new

    h_fin, c_fin = lax.fori_loop(0, Tc, step, (h_sc[...], c_sc[...]),
                                 unroll=True)
    h_sc[...] = h_fin
    c_sc[...] = c_fin

    # ---- Last time chunk: dropout (eval mode == identity) + fused Linear.
    @pl.when(t_blk == pl.num_programs(1) - 1)
    def _():
        out_ref[...] = (
            jnp.dot(h_fin.astype(wl_ref.dtype), wl_ref[...],
                    preferred_element_type=jnp.float32)
            + bl_ref[...]
        )


def rnn_encoder_forward(x, params, *, compute_dtype=jnp.bfloat16,
                        time_chunk=None, batch_block=None):
    """x: (B, T, D) float32.  Returns (B, out_size) float32."""
    B, T, D = x.shape
    wih, whh, b_ih, b_hh, wl, bl = (
        params["weight_ih"], params["weight_hh"], params["bias_ih"],
        params["bias_hh"], params["weight_l"], params["bias_l"],
    )
    H = whh.shape[1]
    O = wl.shape[0]
    f32 = jnp.float32
    is_bf16 = jnp.dtype(compute_dtype) == jnp.dtype(jnp.bfloat16)

    # ---- padded, lane/sublane-aligned sizes -------------------------------
    sub = 16 if is_bf16 else 8            # sublane packing of the compute dtype
    Bp = _round_up(B, sub)
    Dp = _round_up(D, 128)                # lane-dense x loads
    Hp = _round_up(H, 128)                # lane-aligned gate boundaries (k*Hp)
    Op = _round_up(O, 128)                # lane-dense output store

    if batch_block is None:
        batch_block = Bp                  # single batch tile (megacore-shardable
    Bp = _round_up(Bp, batch_block)       # when B is large and batch_block < Bp)
    n_b = Bp // batch_block

    if time_chunk is None:                # largest divisor of T, capped at 16
        time_chunk = 1
        for cand in range(min(T, 16), 0, -1):
            if T % cand == 0:
                time_chunk = cand
                break
    assert T % time_chunk == 0, "time_chunk must divide T"
    n_t = T // time_chunk
    Tc, Bt = time_chunk, batch_block

    # ---- pad + re-layout parameters (gate order [i, f, g, o]) -------------
    def pad_gates(w_t, rows_pad):         # (rows, 4H) -> (rows_pad, 4Hp)
        rows = w_t.shape[0]
        out = jnp.zeros((rows_pad, 4 * Hp), f32)
        for k in range(4):
            out = out.at[:rows, k * Hp:k * Hp + H].set(w_t[:, k * H:(k + 1) * H])
        return out

    wih_p = pad_gates(jnp.transpose(wih), Dp).astype(compute_dtype)   # (Dp, 4Hp)
    whh_p = pad_gates(jnp.transpose(whh), Hp).astype(compute_dtype)   # (Hp, 4Hp)

    bsum = (b_ih + b_hh).astype(f32)
    bias = jnp.zeros((1, 4 * Hp), f32)
    for k in range(4):
        bias = bias.at[0, k * Hp:k * Hp + H].set(bsum[k * H:(k + 1) * H])

    wl_p = (jnp.zeros((Hp, Op), f32)
            .at[:H, :O].set(jnp.transpose(wl))
            .astype(compute_dtype))                                   # (Hp, Op)
    bl_p = jnp.zeros((1, Op), f32).at[0, :O].set(bl)

    # ---- time-major, padded, compute-dtype input ---------------------------
    x_tm = jnp.transpose(x, (1, 0, 2))                                # (T, B, D)
    x_p = jnp.zeros((T, Bp, Dp), compute_dtype)
    x_p = x_p.at[:, :B, :D].set(x_tm.astype(compute_dtype))

    kernel = functools.partial(_lstm_encoder_kernel,
                               hidden_pad=Hp, time_chunk=Tc)

    # ---- explicit VMEM budget (inputs/outputs are double-buffered) --------
    cd = jnp.dtype(compute_dtype).itemsize
    vmem_needed = (
        2 * (Tc * Bt * Dp * cd            # x chunk
             + Dp * 4 * Hp * cd           # W_ih^T
             + Hp * 4 * Hp * cd           # W_hh^T
             + 4 * Hp * 4                 # bias
             + Hp * Op * cd               # W_l^T
             + Op * 4                     # b_l
             + Bt * Op * 4)               # output tile
        + 2 * Bt * Hp * 4                 # h, c scratch
        + Tc * Bt * 4 * Hp * 4            # hoisted projection scratch
    )
    vmem_limit = int(min(100 * 1024 * 1024, max(8 * 1024 * 1024, 2 * vmem_needed)))

    out_p = pl.pallas_call(
        kernel,
        out_shape=jax.ShapeDtypeStruct((Bp, Op), f32),
        grid_spec=pltpu.PrefetchScalarGridSpec(
            num_scalar_prefetch=0,
            grid=(n_b, n_t),
            in_specs=[
                pl.BlockSpec((Tc, Bt, Dp), lambda b, t: (t, b, 0)),   # x chunk
                pl.BlockSpec((Dp, 4 * Hp), lambda b, t: (0, 0)),      # W_ih^T
                pl.BlockSpec((Hp, 4 * Hp), lambda b, t: (0, 0)),      # W_hh^T
                pl.BlockSpec((1, 4 * Hp), lambda b, t: (0, 0)),       # bias
                pl.BlockSpec((Hp, Op), lambda b, t: (0, 0)),          # linear W^T
                pl.BlockSpec((1, Op), lambda b, t: (0, 0)),           # linear b
            ],
            out_specs=pl.BlockSpec((Bt, Op), lambda b, t: (b, 0)),
            scratch_shapes=[
                pltpu.VMEM((Bt, Hp), f32),                 # h state
                pltpu.VMEM((Bt, Hp), f32),                 # c state
                pltpu.VMEM((Tc * Bt, 4 * Hp), f32),        # hoisted x-projection
            ],
        ),
        compiler_params=pltpu.CompilerParams(
            dimension_semantics=("parallel", "arbitrary"),  # batch ∥, time serial
            vmem_limit_bytes=vmem_limit,
        ),
    )(x_p, wih_p, whh_p, bias, wl_p, bl_p)

    return out_p[:B, :O]


def rnn_encoder_reference(x, params):
    """Pure-JAX reference mirroring PyTorch nn.LSTM(batch_first) + Linear (f32)."""
    wih, whh, b_ih, b_hh, wl, bl = (
        params["weight_ih"], params["weight_hh"], params["bias_ih"],
        params["bias_hh"], params["weight_l"], params["bias_l"],
    )
    B = x.shape[0]
    H = whh.shape[1]

    def step(carry, x_t):
        h, c = carry
        gates = x_t @ wih.T + b_ih + h @ whh.T + b_hh
        i = jax.nn.sigmoid(gates[:, 0 * H:1 * H])
        f = jax.nn.sigmoid(gates[:, 1 * H:2 * H])
        g = jnp.tanh(gates[:, 2 * H:3 * H])
        o = jax.nn.sigmoid(gates[:, 3 * H:4 * H])
        c_new = f * c + i * g
        h_new = o * jnp.tanh(c_new)
        return (h_new, c_new), None

    h0 = jnp.zeros((B, H), jnp.float32)
    c0 = jnp.zeros((B, H), jnp.float32)
    (h_last, _), _ = lax.scan(step, (h0, c0), jnp.transpose(x, (1, 0, 2)))
    return h_last @ wl.T + bl


def init_params(key, in_size, hidden_size, out_size):
    """Deterministic init matching PyTorch LSTM/Linear parameter shapes."""
    k = jax.random.split(key, 6)
    s = 1.0 / jnp.sqrt(hidden_size)
    u = lambda kk, shape: jax.random.uniform(kk, shape, jnp.float32, -s, s)
    return {
        "weight_ih": u(k[0], (4 * hidden_size, in_size)),
        "weight_hh": u(k[1], (4 * hidden_size, hidden_size)),
        "bias_ih":   u(k[2], (4 * hidden_size,)),
        "bias_hh":   u(k[3], (4 * hidden_size,)),
        "weight_l":  u(k[4], (out_size, hidden_size)),
        "bias_l":    u(k[5], (out_size,)),
    }


if __name__ == "__main__":
    B, T, D = 2, 8, 16          # batch, sequence length, in_size
    H, O = 32, 16               # hidden_size, out_size

    key = jax.random.PRNGKey(0)
    k_x, k_p = jax.random.split(key)
    x = jax.random.normal(k_x, (B, T, D), jnp.float32)
    params = init_params(k_p, D, H, O)

    y_ref = jax.block_until_ready(rnn_encoder_reference(x, params))

    # Exact-math check: f32 operands end-to-end.
    y_f32 = jax.block_until_ready(
        rnn_encoder_forward(x, params, compute_dtype=jnp.float32))
    assert y_f32.shape == (B, O)
    assert jnp.allclose(y_f32, y_ref, atol=1e-4, rtol=1e-4), "f32 mismatch"

    # Optimized path: bf16 matmul operands, f32 accumulation/state.
    y_bf16 = jax.block_until_ready(
        rnn_encoder_forward(x, params, compute_dtype=jnp.bfloat16))
    assert y_bf16.shape == (B, O)
    assert jnp.allclose(y_bf16, y_ref, atol=5e-2, rtol=5e-2), "bf16 mismatch"

    print("KERNEL_OK")
</pallas_src>

<mosaic_0001>
module attributes {stable_mosaic.version = 11 : i64} {
  func.func @_lstm_encoder_kernel(%arg0: i32, %arg1: i32, %arg2: memref<8x8x128xf32, #tpu.memory_space<vmem>>, %arg3: memref<128x512xf32, #tpu.memory_space<vmem>>, %arg4: memref<128x512xf32, #tpu.memory_space<vmem>>, %arg5: memref<1x512xf32, #tpu.memory_space<vmem>>, %arg6: memref<128x128xf32, #tpu.memory_space<vmem>>, %arg7: memref<1x128xf32, #tpu.memory_space<vmem>>, %arg8: memref<8x128xf32, #tpu.memory_space<vmem>>, %arg9: memref<8x128xf32, #tpu.memory_space<vmem>>, %arg10: memref<8x128xf32, #tpu.memory_space<vmem>>, %arg11: memref<64x512xf32, #tpu.memory_space<vmem>>) attributes {dimension_semantics = [#tpu.dimension_semantics<parallel>, #tpu.dimension_semantics<arbitrary>], iteration_bounds = array<i64: 1, 1>, scalar_prefetch = 0 : i64, scratch_operands = 3 : i64, tpu.core_type = #tpu.core_type<tc>, window_params = [{transform_indices = @transform_0, window_bounds = array<i64: 8, 8, 128>}, {pipeline_mode = #tpu.pipeline_mode<synchronous>, transform_indices = @transform_1, window_bounds = array<i64: 128, 512>}, {pipeline_mode = #tpu.pipeline_mode<synchronous>, transform_indices = @transform_2, window_bounds = array<i64: 128, 512>}, {pipeline_mode = #tpu.pipeline_mode<synchronous>, transform_indices = @transform_3, window_bounds = array<i64: 1, 512>}, {pipeline_mode = #tpu.pipeline_mode<synchronous>, transform_indices = @transform_4, window_bounds = array<i64: 128, 128>}, {pipeline_mode = #tpu.pipeline_mode<synchronous>, transform_indices = @transform_5, window_bounds = array<i64: 1, 128>}, {transform_indices = @transform_6, window_bounds = array<i64: 8, 128>}]} {
    %c0_i32 = arith.constant 0 : i32
    %0 = arith.cmpi eq, %arg1, %c0_i32 : i32
    %1 = arith.extui %0 : i1 to i32
    %c0_i32_0 = arith.constant 0 : i32
    %2 = arith.cmpi ne, %1, %c0_i32_0 : i32
    scf.if %2 {
      %cst_70 = arith.constant 0.000000e+00 : f32
      %259 = vector.broadcast %cst_70 : f32 to vector<8x128xf32>
      %c0_71 = arith.constant 0 : index
      %c0_72 = arith.constant 0 : index
      %260 = vector.load %arg9[%c0_71, %c0_72] : memref<8x128xf32, #tpu.memory_space<vmem>>, vector<8x128xf32>
      tpu.vector_store %arg9[%c0_71, %c0_72], %259 {strides = array<i32>} : memref<8x128xf32, #tpu.memory_space<vmem>>, vector<8x128xf32>,
      %cst_73 = arith.constant 0.000000e+00 : f32
      %261 = vector.broadcast %cst_73 : f32 to vector<8x128xf32>
      %c0_74 = arith.constant 0 : index
      %c0_75 = arith.constant 0 : index
      %262 = vector.load %arg10[%c0_74, %c0_75] : memref<8x128xf32, #tpu.memory_space<vmem>>, vector<8x128xf32>
      tpu.vector_store %arg10[%c0_74, %c0_75], %261 {strides = array<i32>} : memref<8x128xf32, #tpu.memory_space<vmem>>, vector<8x128xf32>,
    } else {
    }
    %c0 = arith.constant 0 : index
    %c0_1 = arith.constant 0 : index
    %c0_2 = arith.constant 0 : index
    %3 = vector.load %arg2[%c0, %c0_1, %c0_2] : memref<8x8x128xf32, #tpu.memory_space<vmem>>, vector<8x8x128xf32>
    %4 = vector.shape_cast %3 : vector<8x8x128xf32> to vector<64x128xf32>
    %c0_3 = arith.constant 0 : index
    %c0_4 = arith.constant 0 : index
    %5 = vector.load %arg3[%c0_3, %c0_4] : memref<128x512xf32, #tpu.memory_space<vmem>>, vector<128x512xf32>
    %cst = arith.constant dense<0.000000e+00> : vector<64x512xf32>
    %6 = tpu.matmul %4, %5, %cst {dimension_numbers = #tpu.dot_dimension_numbers<[1], [0], [0], [1], [0, 0, 1, 1], [], []>} : vector<64x128xf32>, vector<128x512xf32>, vector<64x512xf32> -> vector<64x512xf32>
    %c0_5 = arith.constant 0 : index
    %c0_6 = arith.constant 0 : index
    %7 = vector.load %arg5[%c0_5, %c0_6] : memref<1x512xf32, #tpu.memory_space<vmem>>, vector<1x512xf32>
    %8 = vector.broadcast %7 : vector<1x512xf32> to vector<64x512xf32>
    %9 = arith.addf %6, %8 : vector<64x512xf32>
    %c0_7 = arith.constant 0 : index
    %c0_8 = arith.constant 0 : index
    %10 = vector.load %arg11[%c0_7, %c0_8] : memref<64x512xf32, #tpu.memory_space<vmem>>, vector<64x512xf32>
    tpu.vector_store %arg11[%c0_7, %c0_8], %9 {strides = array<i32>} : memref<64x512xf32, #tpu.memory_space<vmem>>, vector<64x512xf32>,
    %c0_9 = arith.constant 0 : index
    %c0_10 = arith.constant 0 : index
    %11 = vector.load %arg4[%c0_9, %c0_10] : memref<128x512xf32, #tpu.memory_space<vmem>>, vector<128x512xf32>
    %c0_11 = arith.constant 0 : index
    %c0_12 = arith.constant 0 : index
    %12 = vector.load %arg9[%c0_11, %c0_12] : memref<8x128xf32, #tpu.memory_space<vmem>>, vector<8x128xf32>
    %c0_13 = arith.constant 0 : index
    %c0_14 = arith.constant 0 : index
    %13 = vector.load %arg10[%c0_13, %c0_14] : memref<8x128xf32, #tpu.memory_space<vmem>>, vector<8x128xf32>
    %c0_i32_15 = arith.constant 0 : i32
    %c8_i32 = arith.constant 8 : i32
    %14 = arith.muli %c0_i32_15, %c8_i32 : i32
    %15 = arith.index_cast %14 : i32 to index
    %c0_16 = arith.constant 0 : index
    %16 = vector.load %arg11[%15, %c0_16] : memref<64x512xf32, #tpu.memory_space<vmem>>, vector<8x512xf32>
    %cst_17 = arith.constant dense<0.000000e+00> : vector<8x512xf32>
    %17 = tpu.matmul %12, %11, %cst_17 {dimension_numbers = #tpu.dot_dimension_numbers<[1], [0], [0], [1], [0, 0, 1, 1], [], []>} : vector<8x128xf32>, vector<128x512xf32>, vector<8x512xf32> -> vector<8x512xf32>
    %18 = arith.addf %16, %17 : vector<8x512xf32>
    %19 = vector.extract_strided_slice %18 {offsets = [0, 0], sizes = [8, 128], strides = [1, 1]} : vector<8x512xf32> to vector<8x128xf32>
    %20 = arith.negf %19 : vector<8x128xf32>
    %21 = math.exp %20 : vector<8x128xf32>
    %cst_18 = arith.constant 1.000000e+00 : f32
    %22 = vector.broadcast %cst_18 : f32 to vector<8x128xf32>
    %23 = arith.addf %22, %21 : vector<8x128xf32>
    %24 = arith.divf %22, %23 : vector<8x128xf32>
    %25 = vector.extract_strided_slice %18 {offsets = [0, 128], sizes = [8, 128], strides = [1, 1]} : vector<8x512xf32> to vector<8x128xf32>
    %26 = arith.negf %25 : vector<8x128xf32>
    %27 = math.exp %26 : vector<8x128xf32>
    %cst_19 = arith.constant 1.000000e+00 : f32
    %28 = vector.broadcast %cst_19 : f32 to vector<8x128xf32>
    %29 = arith.addf %28, %27 : vector<8x128xf32>
    %30 = arith.divf %28, %29 : vector<8x128xf32>
    %31 = vector.extract_strided_slice %18 {offsets = [0, 256], sizes = [8, 128], strides = [1, 1]} : vector<8x512xf32> to vector<8x128xf32>
    %32 = math.tanh %31 : vector<8x128xf32>
    %33 = vector.extract_strided_slice %18 {offsets = [0, 384], sizes = [8, 128], strides = [1, 1]} : vector<8x512xf32> to vector<8x128xf32>
    %34 = arith.negf %33 : vector<8x128xf32>
    %35 = math.exp %34 : vector<8x128xf32>
    %cst_20 = arith.constant 1.000000e+00 : f32
    %36 = vector.broadcast %cst_20 : f32 to vector<8x128xf32>
    %37 = arith.addf %36, %35 : vector<8x128xf32>
    %38 = arith.divf %36, %37 : vector<8x128xf32>
    %39 = arith.mulf %30, %13 : vector<8x128xf32>
    %40 = arith.mulf %24, %32 : vector<8x128xf32>
    %41 = arith.addf %39, %40 : vector<8x128xf32>
    %42 = math.tanh %41 : vector<8x128xf32>
    %43 = arith.mulf %38, %42 : vector<8x128xf32>
    %c1_i32 = arith.constant 1 : i32
    %c8_i32_21 = arith.constant 8 : i32
    %44 = arith.muli %c1_i32, %c8_i32_21 : i32
    %45 = arith.index_cast %44 : i32 to index
    %c0_22 = arith.constant 0 : index
    %46 = vector.load %arg11[%45, %c0_22] : memref<64x512xf32, #tpu.memory_space<vmem>>, vector<8x512xf32>
    %cst_23 = arith.constant dense<0.000000e+00> : vector<8x512xf32>
    %47 = tpu.matmul %43, %11, %cst_23 {dimension_numbers = #tpu.dot_dimension_numbers<[1], [0], [0], [1], [0, 0, 1, 1], [], []>} : vector<8x128xf32>, vector<128x512xf32>, vector<8x512xf32> -> vector<8x512xf32>
    %48 = arith.addf %46, %47 : vector<8x512xf32>
    %49 = vector.extract_strided_slice %48 {offsets = [0, 0], sizes = [8, 128], strides = [1, 1]} : vector<8x512xf32> to vector<8x128xf32>
    %50 = arith.negf %49 : vector<8x128xf32>
    %51 = math.exp %50 : vector<8x128xf32>
    %cst_24 = arith.constant 1.000000e+00 : f32
    %52 = vector.broadcast %cst_24 : f32 to vector<8x128xf32>
    %53 = arith.addf %52, %51 : vector<8x128xf32>
    %54 = arith.divf %52, %53 : vector<8x128xf32>
    %55 = vector.extract_strided_slice %48 {offsets = [0, 128], sizes = [8, 128], strides = [1, 1]} : vector<8x512xf32> to vector<8x128xf32>
    %56 = arith.negf %55 : vector<8x128xf32>
    %57 = math.exp %56 : vector<8x128xf32>
    %cst_25 = arith.constant 1.000000e+00 : f32
    %58 = vector.broadcast %cst_25 : f32 to vector<8x128xf32>
    %59 = arith.addf %58, %57 : vector<8x128xf32>
    %60 = arith.divf %58, %59 : vector<8x128xf32>
    %61 = vector.extract_strided_slice %48 {offsets = [0, 256], sizes = [8, 128], strides = [1, 1]} : vector<8x512xf32> to vector<8x128xf32>
    %62 = math.tanh %61 : vector<8x128xf32>
    %63 = vector.extract_strided_slice %48 {offsets = [0, 384], sizes = [8, 128], strides = [1, 1]} : vector<8x512xf32> to vector<8x128xf32>
    %64 = arith.negf %63 : vector<8x128xf32>
    %65 = math.exp %64 : vector<8x128xf32>
    %cst_26 = arith.constant 1.000000e+00 : f32
    %66 = vector.broadcast %cst_26 : f32 to vector<8x128xf32>
    %67 = arith.addf %66, %65 : vector<8x128xf32>
    %68 = arith.divf %66, %67 : vector<8x128xf32>
    %69 = arith.mulf %60, %41 : vector<8x128xf32>
    %70 = arith.mulf %54, %62 : vector<8x128xf32>
    %71 = arith.addf %69, %70 : vector<8x128xf32>
    %72 = math.tanh %71 : vector<8x128xf32>
    %73 = arith.mulf %68, %72 : vector<8x128xf32>
    %c2_i32 = arith.constant 2 : i32
    %c8_i32_27 = arith.constant 8 : i32
    %74 = arith.muli %c2_i32, %c8_i32_27 : i32
    %75 = arith.index_cast %74 : i32 to index
    %c0_28 = arith.constant 0 : index
    %76 = vector.load %arg11[%75, %c0_28] : memref<64x512xf32, #tpu.memory_space<vmem>>, vector<8x512xf32>
    %cst_29 = arith.constant dense<0.000000e+00> : vector<8x512xf32>
    %77 = tpu.matmul %73, %11, %cst_29 {dimension_numbers = #tpu.dot_dimension_numbers<[1], [0], [0], [1], [0, 0, 1, 1], [], []>} : vector<8x128xf32>, vector<128x512xf32>, vector<8x512xf32> -> vector<8x512xf32>
    %78 = arith.addf %76, %77 : vector<8x512xf32>
    %79 = vector.extract_strided_slice %78 {offsets = [0, 0], sizes = [8, 128], strides = [1, 1]} : vector<8x512xf32> to vector<8x128xf32>
    %80 = arith.negf %79 : vector<8x128xf32>
    %81 = math.exp %80 : vector<8x128xf32>
    %cst_30 = arith.constant 1.000000e+00 : f32
    %82 = vector.broadcast %cst_30 : f32 to vector<8x128xf32>
    %83 = arith.addf %82, %81 : vector<8x128xf32>
    %84 = arith.divf %82, %83 : vector<8x128xf32>
    %85 = vector.extract_strided_slice %78 {offsets = [0, 128], sizes = [8, 128], strides = [1, 1]} : vector<8x512xf32> to vector<8x128xf32>
    %86 = arith.negf %85 : vector<8x128xf32>
    %87 = math.exp %86 : vector<8x128xf32>
    %cst_31 = arith.constant 1.000000e+00 : f32
    %88 = vector.broadcast %cst_31 : f32 to vector<8x128xf32>
    %89 = arith.addf %88, %87 : vector<8x128xf32>
    %90 = arith.divf %88, %89 : vector<8x128xf32>
    %91 = vector.extract_strided_slice %78 {offsets = [0, 256], sizes = [8, 128], strides = [1, 1]} : vector<8x512xf32> to vector<8x128xf32>
    %92 = math.tanh %91 : vector<8x128xf32>
    %93 = vector.extract_strided_slice %78 {offsets = [0, 384], sizes = [8, 128], strides = [1, 1]} : vector<8x512xf32> to vector<8x128xf32>
    %94 = arith.negf %93 : vector<8x128xf32>
    %95 = math.exp %94 : vector<8x128xf32>
    %cst_32 = arith.constant 1.000000e+00 : f32
    %96 = vector.broadcast %cst_32 : f32 to vector<8x128xf32>
    %97 = arith.addf %96, %95 : vector<8x128xf32>
    %98 = arith.divf %96, %97 : vector<8x128xf32>
    %99 = arith.mulf %90, %71 : vector<8x128xf32>
    %100 = arith.mulf %84, %92 : vector<8x128xf32>
    %101 = arith.addf %99, %100 : vector<8x128xf32>
    %102 = math.tanh %101 : vector<8x128xf32>
    %103 = arith.mulf %98, %102 : vector<8x128xf32>
    %c3_i32 = arith.constant 3 : i32
    %c8_i32_33 = arith.constant 8 : i32
    %104 = arith.muli %c3_i32, %c8_i32_33 : i32
    %105 = arith.index_cast %104 : i32 to index
    %c0_34 = arith.constant 0 : index
    %106 = vector.load %arg11[%105, %c0_34] : memref<64x512xf32, #tpu.memory_space<vmem>>, vector<8x512xf32>
    %cst_35 = arith.constant dense<0.000000e+00> : vector<8x512xf32>
    %107 = tpu.matmul %103, %11, %cst_35 {dimension_numbers = #tpu.dot_dimension_numbers<[1], [0], [0], [1], [0, 0, 1, 1], [], []>} : vector<8x128xf32>, vector<128x512xf32>, vector<8x512xf32> -> vector<8x512xf32>
    %108 = arith.addf %106, %107 : vector<8x512xf32>
    %109 = vector.extract_strided_slice %108 {offsets = [0, 0], sizes = [8, 128], strides = [1, 1]} : vector<8x512xf32> to vector<8x128xf32>
    %110 = arith.negf %109 : vector<8x128xf32>
    %111 = math.exp %110 : vector<8x128xf32>
    %cst_36 = arith.constant 1.000000e+00 : f32
    %112 = vector.broadcast %cst_36 : f32 to vector<8x128xf32>
    %113 = arith.addf %112, %111 : vector<8x128xf32>
    %114 = arith.divf %112, %113 : vector<8x128xf32>
    %115 = vector.extract_strided_slice %108 {offsets = [0, 128], sizes = [8, 128], strides = [1, 1]} : vector<8x512xf32> to vector<8x128xf32>
    %116 = arith.negf %115 : vector<8x128xf32>
    %117 = math.exp %116 : vector<8x128xf32>
    %cst_37 = arith.constant 1.000000e+00 : f32
    %118 = vector.broadcast %cst_37 : f32 to vector<8x128xf32>
    %119 = arith.addf %118, %117 : vector<8x128xf32>
    %120 = arith.divf %118, %119 : vector<8x128xf32>
    %121 = vector.extract_strided_slice %108 {offsets = [0, 256], sizes = [8, 128], strides = [1, 1]} : vector<8x512xf32> to vector<8x128xf32>
    %122 = math.tanh %121 : vector<8x128xf32>
    %123 = vector.extract_strided_slice %108 {offsets = [0, 384], sizes = [8, 128], strides = [1, 1]} : vector<8x512xf32> to vector<8x128xf32>
    %124 = arith.negf %123 : vector<8x128xf32>
    %125 = math.exp %124 : vector<8x128xf32>
    %cst_38 = arith.constant 1.000000e+00 : f32
    %126 = vector.broadcast %cst_38 : f32 to vector<8x128xf32>
    %127 = arith.addf %126, %125 : vector<8x128xf32>
    %128 = arith.divf %126, %127 : vector<8x128xf32>
    %129 = arith.mulf %120, %101 : vector<8x128xf32>
    %130 = arith.mulf %114, %122 : vector<8x128xf32>
    %131 = arith.addf %129, %130 : vector<8x128xf32>
    %132 = math.tanh %131 : vector<8x128xf32>
    %133 = arith.mulf %128, %132 : vector<8x128xf32>
    %c4_i32 = arith.constant 4 : i32
    %c8_i32_39 = arith.constant 8 : i32
    %134 = arith.muli %c4_i32, %c8_i32_39 : i32
    %135 = arith.index_cast %134 : i32 to index
    %c0_40 = arith.constant 0 : index
    %136 = vector.load %arg11[%135, %c0_40] : memref<64x512xf32, #tpu.memory_space<vmem>>, vector<8x512xf32>
    %cst_41 = arith.constant dense<0.000000e+00> : vector<8x512xf32>
    %137 = tpu.matmul %133, %11, %cst_41 {dimension_numbers = #tpu.dot_dimension_numbers<[1], [0], [0], [1], [0, 0, 1, 1], [], []>} : vector<8x128xf32>, vector<128x512xf32>, vector<8x512xf32> -> vector<8x512xf32>
    %138 = arith.addf %136, %137 : vector<8x512xf32>
    %139 = vector.extract_strided_slice %138 {offsets = [0, 0], sizes = [8, 128], strides = [1, 1]} : vector<8x512xf32> to vector<8x128xf32>
    %140 = arith.negf %139 : vector<8x128xf32>
    %141 = math.exp %140 : vector<8x128xf32>
    %cst_42 = arith.constant 1.000000e+00 : f32
    %142 = vector.broadcast %cst_42 : f32 to vector<8x128xf32>
    %143 = arith.addf %142, %141 : vector<8x128xf32>
    %144 = arith.divf %142, %143 : vector<8x128xf32>
    %145 = vector.extract_strided_slice %138 {offsets = [0, 128], sizes = [8, 128], strides = [1, 1]} : vector<8x512xf32> to vector<8x128xf32>
    %146 = arith.negf %145 : vector<8x128xf32>
    %147 = math.exp %146 : vector<8x128xf32>
    %cst_43 = arith.constant 1.000000e+00 : f32
    %148 = vector.broadcast %cst_43 : f32 to vector<8x128xf32>
    %149 = arith.addf %148, %147 : vector<8x128xf32>
    %150 = arith.divf %148, %149 : vector<8x128xf32>
    %151 = vector.extract_strided_slice %138 {offsets = [0, 256], sizes = [8, 128], strides = [1, 1]} : vector<8x512xf32> to vector<8x128xf32>
    %152 = math.tanh %151 : vector<8x128xf32>
    %153 = vector.extract_strided_slice %138 {offsets = [0, 384], sizes = [8, 128], strides = [1, 1]} : vector<8x512xf32> to vector<8x128xf32>
    %154 = arith.negf %153 : vector<8x128xf32>
    %155 = math.exp %154 : vector<8x128xf32>
    %cst_44 = arith.constant 1.000000e+00 : f32
    %156 = vector.broadcast %cst_44 : f32 to vector<8x128xf32>
    %157 = arith.addf %156, %155 : vector<8x128xf32>
    %158 = arith.divf %156, %157 : vector<8x128xf32>
    %159 = arith.mulf %150, %131 : vector<8x128xf32>
    %160 = arith.mulf %144, %152 : vector<8x128xf32>
    %161 = arith.addf %159, %160 : vector<8x128xf32>
    %162 = math.tanh %161 : vector<8x128xf32>
    %163 = arith.mulf %158, %162 : vector<8x128xf32>
    %c5_i32 = arith.constant 5 : i32
    %c8_i32_45 = arith.constant 8 : i32
    %164 = arith.muli %c5_i32, %c8_i32_45 : i32
    %165 = arith.index_cast %164 : i32 to index
    %c0_46 = arith.constant 0 : index
    %166 = vector.load %arg11[%165, %c0_46] : memref<64x512xf32, #tpu.memory_space<vmem>>, vector<8x512xf32>
    %cst_47 = arith.constant dense<0.000000e+00> : vector<8x512xf32>
    %167 = tpu.matmul %163, %11, %cst_47 {dimension_numbers = #tpu.dot_dimension_numbers<[1], [0], [0], [1], [0, 0, 1, 1], [], []>} : vector<8x128xf32>, vector<128x512xf32>, vector<8x512xf32> -> vector<8x512xf32>
    %168 = arith.addf %166, %167 : vector<8x512xf32>
    %169 = vector.extract_strided_slice %168 {offsets = [0, 0], sizes = [8, 128], strides = [1, 1]} : vector<8x512xf32> to vector<8x128xf32>
    %170 = arith.negf %169 : vector<8x128xf32>
    %171 = math.exp %170 : vector<8x128xf32>
    %cst_48 = arith.constant 1.000000e+00 : f32
    %172 = vector.broadcast %cst_48 : f32 to vector<8x128xf32>
    %173 = arith.addf %172, %171 : vector<8x128xf32>
    %174 = arith.divf %172, %173 : vector<8x128xf32>
    %175 = vector.extract_strided_slice %168 {offsets = [0, 128], sizes = [8, 128], strides = [1, 1]} : vector<8x512xf32> to vector<8x128xf32>
    %176 = arith.negf %175 : vector<8x128xf32>
    %177 = math.exp %176 : vector<8x128xf32>
    %cst_49 = arith.constant 1.000000e+00 : f32
    %178 = vector.broadcast %cst_49 : f32 to vector<8x128xf32>
    %179 = arith.addf %178, %177 : vector<8x128xf32>
    %180 = arith.divf %178, %179 : vector<8x128xf32>
    %181 = vector.extract_strided_slice %168 {offsets = [0, 256], sizes = [8, 128], strides = [1, 1]} : vector<8x512xf32> to vector<8x128xf32>
    %182 = math.tanh %181 : vector<8x128xf32>
    %183 = vector.extract_strided_slice %168 {offsets = [0, 384], sizes = [8, 128], strides = [1, 1]} : vector<8x512xf32> to vector<8x128xf32>
    %184 = arith.negf %183 : vector<8x128xf32>
    %185 = math.exp %184 : vector<8x128xf32>
    %cst_50 = arith.constant 1.000000e+00 : f32
    %186 = vector.broadcast %cst_50 : f32 to vector<8x128xf32>
    %187 = arith.addf %186, %185 : vector<8x128xf32>
    %188 = arith.divf %186, %187 : vector<8x128xf32>
    %189 = arith.mulf %180, %161 : vector<8x128xf32>
    %190 = arith.mulf %174, %182 : vector<8x128xf32>
    %191 = arith.addf %189, %190 : vector<8x128xf32>
    %192 = math.tanh %191 : vector<8x128xf32>
    %193 = arith.mulf %188, %192 : vector<8x128xf32>
    %c6_i32 = arith.constant 6 : i32
    %c8_i32_51 = arith.constant 8 : i32
    %194 = arith.muli %c6_i32, %c8_i32_51 : i32
    %195 = arith.index_cast %194 : i32 to index
    %c0_52 = arith.constant 0 : index
    %196 = vector.load %arg11[%195, %c0_52] : memref<64x512xf32, #tpu.memory_space<vmem>>, vector<8x512xf32>
    %cst_53 = arith.constant dense<0.000000e+00> : vector<8x512xf32>
    %197 = tpu.matmul %193, %11, %cst_53 {dimension_numbers = #tpu.dot_dimension_numbers<[1], [0], [0], [1], [0, 0, 1, 1], [], []>} : vector<8x128xf32>, vector<128x512xf32>, vector<8x512xf32> -> vector<8x512xf32>
    %198 = arith.addf %196, %197 : vector<8x512xf32>
    %199 = vector.extract_strided_slice %198 {offsets = [0, 0], sizes = [8, 128], strides = [1, 1]} : vector<8x512xf32> to vector<8x128xf32>
    %200 = arith.negf %199 : vector<8x128xf32>
    %201 = math.exp %200 : vector<8x128xf32>
    %cst_54 = arith.constant 1.000000e+00 : f32
    %202 = vector.broadcast %cst_54 : f32 to vector<8x128xf32>
    %203 = arith.addf %202, %201 : vector<8x128xf32>
    %204 = arith.divf %202, %203 : vector<8x128xf32>
    %205 = vector.extract_strided_slice %198 {offsets = [0, 128], sizes = [8, 128], strides = [1, 1]} : vector<8x512xf32> to vector<8x128xf32>
    %206 = arith.negf %205 : vector<8x128xf32>
    %207 = math.exp %206 : vector<8x128xf32>
    %cst_55 = arith.constant 1.000000e+00 : f32
    %208 = vector.broadcast %cst_55 : f32 to vector<8x128xf32>
    %209 = arith.addf %208, %207 : vector<8x128xf32>
    %210 = arith.divf %208, %209 : vector<8x128xf32>
    %211 = vector.extract_strided_slice %198 {offsets = [0, 256], sizes = [8, 128], strides = [1, 1]} : vector<8x512xf32> to vector<8x128xf32>
    %212 = math.tanh %211 : vector<8x128xf32>
    %213 = vector.extract_strided_slice %198 {offsets = [0, 384], sizes = [8, 128], strides = [1, 1]} : vector<8x512xf32> to vector<8x128xf32>
    %214 = arith.negf %213 : vector<8x128xf32>
    %215 = math.exp %214 : vector<8x128xf32>
    %cst_56 = arith.constant 1.000000e+00 : f32
    %216 = vector.broadcast %cst_56 : f32 to vector<8x128xf32>
    %217 = arith.addf %216, %215 : vector<8x128xf32>
    %218 = arith.divf %216, %217 : vector<8x128xf32>
    %219 = arith.mulf %210, %191 : vector<8x128xf32>
    %220 = arith.mulf %204, %212 : vector<8x128xf32>
    %221 = arith.addf %219, %220 : vector<8x128xf32>
    %222 = math.tanh %221 : vector<8x128xf32>
    %223 = arith.mulf %218, %222 : vector<8x128xf32>
    %c7_i32 = arith.constant 7 : i32
    %c8_i32_57 = arith.constant 8 : i32
    %224 = arith.muli %c7_i32, %c8_i32_57 : i32
    %225 = arith.index_cast %224 : i32 to index
    %c0_58 = arith.constant 0 : index
    %226 = vector.load %arg11[%225, %c0_58] : memref<64x512xf32, #tpu.memory_space<vmem>>, vector<8x512xf32>
    %cst_59 = arith.constant dense<0.000000e+00> : vector<8x512xf32>
    %227 = tpu.matmul %223, %11, %cst_59 {dimension_numbers = #tpu.dot_dimension_numbers<[1], [0], [0], [1], [0, 0, 1, 1], [], []>} : vector<8x128xf32>, vector<128x512xf32>, vector<8x512xf32> -> vector<8x512xf32>
    %228 = arith.addf %226, %227 : vector<8x512xf32>
    %229 = vector.extract_strided_slice %228 {offsets = [0, 0], sizes = [8, 128], strides = [1, 1]} : vector<8x512xf32> to vector<8x128xf32>
    %230 = arith.negf %229 : vector<8x128xf32>
    %231 = math.exp %230 : vector<8x128xf32>
    %cst_60 = arith.constant 1.000000e+00 : f32
    %232 = vector.broadcast %cst_60 : f32 to vector<8x128xf32>
    %233 = arith.addf %232, %231 : vector<8x128xf32>
    %234 = arith.divf %232, %233 : vector<8x128xf32>
    %235 = vector.extract_strided_slice %228 {offsets = [0, 128], sizes = [8, 128], strides = [1, 1]} : vector<8x512xf32> to vector<8x128xf32>
    %236 = arith.negf %235 : vector<8x128xf32>
    %237 = math.exp %236 : vector<8x128xf32>
    %cst_61 = arith.constant 1.000000e+00 : f32
    %238 = vector.broadcast %cst_61 : f32 to vector<8x128xf32>
    %239 = arith.addf %238, %237 : vector<8x128xf32>
    %240 = arith.divf %238, %239 : vector<8x128xf32>
    %241 = vector.extract_strided_slice %228 {offsets = [0, 256], sizes = [8, 128], strides = [1, 1]} : vector<8x512xf32> to vector<8x128xf32>
    %242 = math.tanh %241 : vector<8x128xf32>
    %243 = vector.extract_strided_slice %228 {offsets = [0, 384], sizes = [8, 128], strides = [1, 1]} : vector<8x512xf32> to vector<8x128xf32>
    %244 = arith.negf %243 : vector<8x128xf32>
    %245 = math.exp %244 : vector<8x128xf32>
    %cst_62 = arith.constant 1.000000e+00 : f32
    %246 = vector.broadcast %cst_62 : f32 to vector<8x128xf32>
    %247 = arith.addf %246, %245 : vector<8x128xf32>
    %248 = arith.divf %246, %247 : vector<8x128xf32>
    %249 = arith.mulf %240, %221 : vector<8x128xf32>
    %250 = arith.mulf %234, %242 : vector<8x128xf32>
    %251 = arith.addf %249, %250 : vector<8x128xf32>
    %252 = math.tanh %251 : vector<8x128xf32>
    %253 = arith.mulf %248, %252 : vector<8x128xf32>
    %c8_i32_63 = arith.constant 8 : i32
    %c0_64 = arith.constant 0 : index
    %c0_65 = arith.constant 0 : index
    %254 = vector.load %arg9[%c0_64, %c0_65] : memref<8x128xf32, #tpu.memory_space<vmem>>, vector<8x128xf32>
    tpu.vector_store %arg9[%c0_64, %c0_65], %253 {strides = array<i32>} : memref<8x128xf32, #tpu.memory_space<vmem>>, vector<8x128xf32>,
    %c0_66 = arith.constant 0 : index
    %c0_67 = arith.constant 0 : index
    %255 = vector.load %arg10[%c0_66, %c0_67] : memref<8x128xf32, #tpu.memory_space<vmem>>, vector<8x128xf32>
    tpu.vector_store %arg10[%c0_66, %c0_67], %251 {strides = array<i32>} : memref<8x128xf32, #tpu.memory_space<vmem>>, vector<8x128xf32>,
    %c0_i32_68 = arith.constant 0 : i32
    %256 = arith.cmpi eq, %arg1, %c0_i32_68 : i32
    %257 = arith.extui %256 : i1 to i32
    %c0_i32_69 = arith.constant 0 : i32
    %258 = arith.cmpi ne, %257, %c0_i32_69 : i32
    scf.if %258 {
      %c0_70 = arith.constant 0 : index
      %c0_71 = arith.constant 0 : index
      %259 = vector.load %arg6[%c0_70, %c0_71] : memref<128x128xf32, #tpu.memory_space<vmem>>, vector<128x128xf32>
      %cst_72 = arith.constant dense<0.000000e+00> : vector<8x128xf32>
      %260 = tpu.matmul %253, %259, %cst_72 {dimension_numbers = #tpu.dot_dimension_numbers<[1], [0], [0], [1], [0, 0, 1, 1], [], []>} : vector<8x128xf32>, vector<128x128xf32>, vector<8x128xf32> -> vector<8x128xf32>
      %c0_73 = arith.constant 0 : index
      %c0_74 = arith.constant 0 : index
      %261 = vector.load %arg7[%c0_73, %c0_74] : memref<1x128xf32, #tpu.memory_space<vmem>>, vector<1x128xf32>
      %262 = vector.broadcast %261 : vector<1x128xf32> to vector<8x128xf32>
      %263 = arith.addf %260, %262 : vector<8x128xf32>
      %c0_75 = arith.constant 0 : index
      %c0_76 = arith.constant 0 : index
      %264 = vector.load %arg8[%c0_75, %c0_76] : memref<8x128xf32, #tpu.memory_space<vmem>>, vector<8x128xf32>
      tpu.vector_store %arg8[%c0_75, %c0_76], %263 {strides = array<i32>} : memref<8x128xf32, #tpu.memory_space<vmem>>, vector<8x128xf32>,
    } else {
    }
    return
  }
  func.func @transform_0(%arg0: i32, %arg1: i32) -> (i32, i32, i32) {
    %c0_i32 = arith.constant 0 : i32
    %c0_i32_0 = arith.constant 0 : i32
    return %arg1, %arg0, %c0_i32 : i32, i32, i32
  }
  func.func @transform_1(%arg0: i32, %arg1: i32) -> (i32, i32) {
    %c0_i32 = arith.constant 0 : i32
    %c0_i32_0 = arith.constant 0 : i32
    %c0_i32_1 = arith.constant 0 : i32
    return %c0_i32, %c0_i32_0 : i32, i32
  }
  func.func @transform_2(%arg0: i32, %arg1: i32) -> (i32, i32) {
    %c0_i32 = arith.constant 0 : i32
    %c0_i32_0 = arith.constant 0 : i32
    %c0_i32_1 = arith.constant 0 : i32
    return %c0_i32, %c0_i32_0 : i32, i32
  }
  func.func @transform_3(%arg0: i32, %arg1: i32) -> (i32, i32) {
    %c0_i32 = arith.constant 0 : i32
    %c0_i32_0 = arith.constant 0 : i32
    %c0_i32_1 = arith.constant 0 : i32
    return %c0_i32, %c0_i32_0 : i32, i32
  }
  func.func @transform_4(%arg0: i32, %arg1: i32) -> (i32, i32) {
    %c0_i32 = arith.constant 0 : i32
    %c0_i32_0 = arith.constant 0 : i32
    %c0_i32_1 = arith.constant 0 : i32
    return %c0_i32, %c0_i32_0 : i32, i32
  }
  func.func @transform_5(%arg0: i32, %arg1: i32) -> (i32, i32) {
    %c0_i32 = arith.constant 0 : i32
    %c0_i32_0 = arith.constant 0 : i32
    %c0_i32_1 = arith.constant 0 : i32
    return %c0_i32, %c0_i32_0 : i32, i32
  }
  func.func @transform_6(%arg0: i32, %arg1: i32) -> (i32, i32) {
    %c0_i32 = arith.constant 0 : i32
    %c0_i32_0 = arith.constant 0 : i32
    return %arg0, %c0_i32 : i32, i32
  }
}

</mosaic_0001>

<llo_original>
// kernel: tpu_custom_call.1
$region0: #{tpu_custom_call.1}
  #allocation0 [shape = 'u32[]', space=smem, size = 0x4, offset = 0x4, fixed_abs, tag = 'smem constant byte address 0x4 - core index']
  #allocation1 [shape = 'u32[144,128]{1,0:T(1,128)}', space=vmem, size = 0x12000, scoped, tag = 'internal scratch']
  #allocation2 [shape = 'f32[8,128]{1,0:T(8,128)}', space=vmem, size = 0x1000, scoped, tag = 'scratch operand']
  #allocation3 [shape = 'f32[8,128]{1,0:T(8,128)}', space=vmem, size = 0x1000, scoped, tag = 'scratch operand']
  #allocation4 [shape = 'f32[64,512]{1,0:T(8,128)}', space=vmem, size = 0x20000, scoped, tag = 'scratch operand']
  %s0 = inlined_call_operand.hbm [shape: f32[8,8,128], index: 0, kind: input, shape index: {}]
  %s1 = inlined_call_operand.hbm [shape: f32[128,512], index: 1, kind: input, shape index: {}]
  %s2 = inlined_call_operand.hbm [shape: f32[128,512], index: 2, kind: input, shape index: {}]
  %s3 = inlined_call_operand.vmem [shape: f32[1,512], index: 3, kind: input, shape index: {}]
  %s4 = inlined_call_operand.hbm [shape: f32[128,128], index: 4, kind: input, shape index: {}]
  %s5 = inlined_call_operand.vmem [shape: f32[1,128], index: 5, kind: input, shape index: {}]
  %s6 = inlined_call_operand.hbm [shape: f32[8,128], index: 6, kind: output, shape index: {}]
  %s7 = sld [smem:[#allocation0]]
  $region58: #{tpu_custom_call.1} parent=0
    _
  %s9 = ssub.s32 1, %s7
  %s10 = scalar_select 0, %s9, %s7
  $region1: #{tpu_custom_call.1} parent=0
    #allocation5 [shape = 'u8[32768]{0}', space=vmem, size = 0x8000, scoped, tag = 'input window, operand 0, single buffered']
    #allocation6 [shape = 's32[1]{0}', space=sflag, size = 0x4, scoped, tag = 'scoped memory for tpu_custom_call.1']
    #allocation7 [shape = 's32[1]{0}', space=sflag, size = 0x4, scoped, tag = 'scoped memory for tpu_custom_call.1']
    #allocation8 [shape = 'u8[262144]{0}', space=vmem, size = 0x40000, scoped, tag = 'input window, operand 1, single buffered']
    #allocation9 [shape = 's32[1]{0}', space=sflag, size = 0x4, scoped, tag = 'scoped memory for tpu_custom_call.1']
    #allocation10 [shape = 'u8[262144]{0}', space=vmem, size = 0x40000, scoped, tag = 'input window, operand 2, single buffered']
    #allocation11 [shape = 'u8[65536]{0}', space=vmem, size = 0x10000, scoped, tag = 'input window, operand 4, single buffered']
    #allocation12 [shape = 's32[1]{0}', space=sflag, size = 0x4, scoped, tag = 'scoped memory for tpu_custom_call.1']
    #allocation13 [shape = 'u8[4096]{0}', space=vmem, size = 0x1000, scoped, tag = 'output window, operand 0, single buffered']
    %11 = vsyncpa [#allocation6], 0
    %12 = vsyncpa [#allocation9], 0
    %13 = vsyncpa [#allocation12], 0
    %14 = vsyncpa [#allocation7], 0
    // Predicated region
    $region2: #{tpu_custom_call.1} parent=1 // pred_check
      _
    $region3: #{tpu_custom_call.1} parent=1 // pred_check_branch
      %16 = sbr.rel (0) target = $region5
    $region4: #{tpu_custom_call.1} parent=1 // pred_region
      %s18 = ssub.s32 1024, 1024
      %19 = vsyncadd [#allocation6], %s18
      %s20 = sshll.u32 [#allocation5], 4
      %s21 = int_to_ptr.vmem [resolvable:$true] %s20
      %26 = dma.hbm_to_vmem [thread:$0]  %s0, 1024, %s21, [#allocation6], 128, 128, 8
    $region5: #{tpu_custom_call.1} parent=1 // pred_fallthru
      _
    // Predicated region
    $region6: #{tpu_custom_call.1} parent=1 // pred_check
      _
    $region7: #{tpu_custom_call.1} parent=1 // pred_check_branch
      %28 = sbr.rel (0) target = $region9
    $region8: #{tpu_custom_call.1} parent=1 // pred_region
      %s30 = ssub.s32 8192, 8192
      %31 = vsyncadd [#allocation9], %s30
      %s32 = sshll.u32 [#allocation8], 4
      %s33 = int_to_ptr.vmem [resolvable:$true] %s32
      %38 = dma.hbm_to_vmem [thread:$0]  %s1, 8192, %s33, [#allocation9], 512, 512, 32
    $region9: #{tpu_custom_call.1} parent=1 // pred_fallthru
      _
    // Predicated region
    $region10: #{tpu_custom_call.1} parent=1 // pred_check
      _
    $region11: #{tpu_custom_call.1} parent=1 // pred_check_branch
      %40 = sbr.rel (0) target = $region13
    $region12: #{tpu_custom_call.1} parent=1 // pred_region
      %s42 = ssub.s32 8192, 8192
      %43 = vsyncadd [#allocation9], %s42
      %s44 = sshll.u32 [#allocation10], 4
      %s45 = int_to_ptr.vmem [resolvable:$true] %s44
      %50 = dma.hbm_to_vmem [thread:$0]  %s2, 8192, %s45, [#allocation9], 512, 512, 32
    $region13: #{tpu_custom_call.1} parent=1 // pred_fallthru
      _
    // Predicated region
    $region14: #{tpu_custom_call.1} parent=1 // pred_check
      _
    $region15: #{tpu_custom_call.1} parent=1 // pred_check_branch
      %52 = sbr.rel (0) target = $region17
    $region16: #{tpu_custom_call.1} parent=1 // pred_region
      _
    $region17: #{tpu_custom_call.1} parent=1 // pred_fallthru
      _
    // Predicated region
    $region18: #{tpu_custom_call.1} parent=1 // pred_check
      _
    $region19: #{tpu_custom_call.1} parent=1 // pred_check_branch
      %54 = sbr.rel (0) target = $region21
    $region20: #{tpu_custom_call.1} parent=1 // pred_region
      %s56 = ssub.s32 2048, 2048
      %57 = vsyncadd [#allocation12], %s56
      %s58 = sshll.u32 [#allocation11], 4
      %s59 = int_to_ptr.vmem [resolvable:$true] %s58
      %64 = dma.hbm_to_vmem [thread:$0]  %s4, 2048, %s59, [#allocation12], 128, 128, 8
    $region21: #{tpu_custom_call.1} parent=1 // pred_fallthru
      _
    // Predicated region
    $region22: #{tpu_custom_call.1} parent=1 // pred_check
      _
    $region23: #{tpu_custom_call.1} parent=1 // pred_check_branch
      %66 = sbr.rel (0) target = $region25
    $region24: #{tpu_custom_call.1} parent=1 // pred_region
      _
    $region25: #{tpu_custom_call.1} parent=1 // pred_fallthru
      _
    // Predicated region
    $region26: #{tpu_custom_call.1} parent=1 // pred_check
      _
    $region27: #{tpu_custom_call.1} parent=1 // pred_check_branch
      %68 = sbr.rel (0) target = $region29
    $region28: #{tpu_custom_call.1} parent=1 // pred_region
      %69 = dma.done [#allocation6], 1024
    $region29: #{tpu_custom_call.1} parent=1 // pred_fallthru
      _
    // Predicated region
    $region30: #{tpu_custom_call.1} parent=1 // pred_check
      _
    $region31: #{tpu_custom_call.1} parent=1 // pred_check_branch
      %71 = sbr.rel (0) target = $region33
    $region32: #{tpu_custom_call.1} parent=1 // pred_region
      %72 = dma.done [#allocation9], 8192
    $region33: #{tpu_custom_call.1} parent=1 // pred_fallthru
      _
    // Predicated region
    $region34: #{tpu_custom_call.1} parent=1 // pred_check
      _
    $region35: #{tpu_custom_call.1} parent=1 // pred_check_branch
      %74 = sbr.rel (0) target = $region37
    $region36: #{tpu_custom_call.1} parent=1 // pred_region
      %75 = dma.done [#allocation9], 8192
    $region37: #{tpu_custom_call.1} parent=1 // pred_fallthru
      _
    // Predicated region
    $region38: #{tpu_custom_call.1} parent=1 // pred_check
      _
    $region39: #{tpu_custom_call.1} parent=1 // pred_check_branch
      %77 = sbr.rel (0) target = $region41
    $region40: #{tpu_custom_call.1} parent=1 // pred_region
      %78 = dma.done [#allocation12], 2048
    $region41: #{tpu_custom_call.1} parent=1 // pred_fallthru
      _
    %p79 = scmp.eq.s32.totalorder 0, 0
    // Predicated region
    $region42: #{tpu_custom_call.1} parent=1 // pred_check
      %p80 = pneg %p79
    $region43: #{tpu_custom_call.1} parent=1 // pred_check_branch
      %82 = sbr.rel (%p80) target = $region45
    $region44: #{tpu_custom_call.1} parent=1 // pred_region
      %83 = vst [vmem:[#allocation2] sm:$0xff] 0.0
      %84 = vst [vmem:[#allocation3] sm:$0xff] 0.0
    $region45: #{tpu_custom_call.1} parent=1 // pred_fallthru
      _
    %v85 = vld [vmem:[#allocation5] sm:$0xff]
    %v86 = vld [vmem:[#allocation5 + $0x8] sm:$0xff]
    %v87 = vld [vmem:[#allocation5 + $0x10] sm:$0xff]
    %v88 = vld [vmem:[#allocation5 + $0x18] sm:$0xff]
    %v89 = vld [vmem:[#allocation5 + $0x20] sm:$0xff]
    %v90 = vld [vmem:[#allocation5 + $0x28] sm:$0xff]
    %v91 = vld [vmem:[#allocation5 + $0x30] sm:$0xff]
    %v92 = vld [vmem:[#allocation5 + $0x38] sm:$0xff]
    %v93 = vld [vmem:[#allocation8] sm:$0xff]
    %v94 = vld [vmem:[#allocation8 + $0x8] sm:$0xff]
    %v95 = vld [vmem:[#allocation8 + $0x10] sm:$0xff]
    %v96 = vld [vmem:[#allocation8 + $0x18] sm:$0xff]
    %v97 = vld [vmem:[#allocation8 + $0x20] sm:$0xff]
    %v98 = vld [vmem:[#allocation8 + $0x28] sm:$0xff]
    %v99 = vld [vmem:[#allocation8 + $0x30] sm:$0xff]
    %v100 = vld [vmem:[#allocation8 + $0x38] sm:$0xff]
    %v101 = vld [vmem:[#allocation8 + $0x40] sm:$0xff]
    %v102 = vld [vmem:[#allocation8 + $0x48] sm:$0xff]
    %v103 = vld [vmem:[#allocation8 + $0x50] sm:$0xff]
    %v104 = vld [vmem:[#allocation8 + $0x58] sm:$0xff]
    %v105 = vld [vmem:[#allocation8 + $0x60] sm:$0xff]
    %v106 = vld [vmem:[#allocation8 + $0x68] sm:$0xff]
    %v107 = vld [vmem:[#allocation8 + $0x70] sm:$0xff]
    %v108 = vld [vmem:[#allocation8 + $0x78] sm:$0xff]
    %v109 = vld [vmem:[#allocation8 + $0x80] sm:$0xff]
    %v110 = vld [vmem:[#allocation8 + $0x88] sm:$0xff]
    %v111 = vld [vmem:[#allocation8 + $0x90] sm:$0xff]
    %v112 = vld [vmem:[#allocation8 + $0x98] sm:$0xff]
    %v113 = vld [vmem:[#allocation8 + $0xa0] sm:$0xff]
    %v114 = vld [vmem:[#allocation8 + $0xa8] sm:$0xff]
    %v115 = vld [vmem:[#allocation8 + $0xb0] sm:$0xff]
    %v116 = vld [vmem:[#allocation8 + $0xb8] sm:$0xff]
    %v117 = vld [vmem:[#allocation8 + $0xc0] sm:$0xff]
    %v118 = vld [vmem:[#allocation8 + $0xc8] sm:$0xff]
    %v119 = vld [vmem:[#allocation8 + $0xd0] sm:$0xff]
    %v120 = vld [vmem:[#allocation8 + $0xd8] sm:$0xff]
    %v121 = vld [vmem:[#allocation8 + $0xe0] sm:$0xff]
    %v122 = vld [vmem:[#allocation8 + $0xe8] sm:$0xff]
    %v123 = vld [vmem:[#allocation8 + $0xf0] sm:$0xff]
    %v124 = vld [vmem:[#allocation8 + $0xf8] sm:$0xff]
    %v125 = vld [vmem:[#allocation8 + $0x100] sm:$0xff]
    %v126 = vld [vmem:[#allocation8 + $0x108] sm:$0xff]
    %v127 = vld [vmem:[#allocation8 + $0x110] sm:$0xff]
    %v128 = vld [vmem:[#allocation8 + $0x118] sm:$0xff]
    %v129 = vld [vmem:[#allocation8 + $0x120] sm:$0xff]
    %v130 = vld [vmem:[#allocation8 + $0x128] sm:$0xff]
    %v131 = vld [vmem:[#allocation8 + $0x130] sm:$0xff]
    %v132 = vld [vmem:[#allocation8 + $0x138] sm:$0xff]
    %v133 = vld [vmem:[#allocation8 + $0x140] sm:$0xff]
    %v134 = vld [vmem:[#allocation8 + $0x148] sm:$0xff]
    %v135 = vld [vmem:[#allocation8 + $0x150] sm:$0xff]
    %v136 = vld [vmem:[#allocation8 + $0x158] sm:$0xff]
    %v137 = vld [vmem:[#allocation8 + $0x160] sm:$0xff]
    %v138 = vld [vmem:[#allocation8 + $0x168] sm:$0xff]
    %v139 = vld [vmem:[#allocation8 + $0x170] sm:$0xff]
    %v140 = vld [vmem:[#allocation8 + $0x178] sm:$0xff]
    %v141 = vld [vmem:[#allocation8 + $0x180] sm:$0xff]
    %v142 = vld [vmem:[#allocation8 + $0x188] sm:$0xff]
    %v143 = vld [vmem:[#allocation8 + $0x190] sm:$0xff]
    %v144 = vld [vmem:[#allocation8 + $0x198] sm:$0xff]
    %v145 = vld [vmem:[#allocation8 + $0x1a0] sm:$0xff]
    %v146 = vld [vmem:[#allocation8 + $0x1a8] sm:$0xff]
    %v147 = vld [vmem:[#allocation8 + $0x1b0] sm:$0xff]
    %v148 = vld [vmem:[#allocation8 + $0x1b8] sm:$0xff]
    %v149 = vld [vmem:[#allocation8 + $0x1c0] sm:$0xff]
    %v150 = vld [vmem:[#allocation8 + $0x1c8] sm:$0xff]
    %v151 = vld [vmem:[#allocation8 + $0x1d0] sm:$0xff]
    %v152 = vld [vmem:[#allocation8 + $0x1d8] sm:$0xff]
    %v153 = vld [vmem:[#allocation8 + $0x1e0] sm:$0xff]
    %v154 = vld [vmem:[#allocation8 + $0x1e8] sm:$0xff]
    %v155 = vld [vmem:[#allocation8 + $0x1f0] sm:$0xff]
    %v156 = vld [vmem:[#allocation8 + $0x1f8] sm:$0xff]
    %v157 = vld [vmem:[%s3] sm:$0xf]
    %v159 = vlaneseq
    %v160 = vshrl.u32 %v159, 7
    %v161 = vsub.s32 0, %v160
    %v162 = vrot.slane %v157, %v161
    %v163 = vlaneseq
    %v164 = vshrl.u32 %v163, 7
    %v165 = vsub.s32 1, %v164
    %v166 = vrot.slane %v157, %v165
    %v167 = vlaneseq
    %v168 = vshrl.u32 %v167, 7
    %v169 = vsub.s32 2, %v168
    %v170 = vrot.slane %v157, %v169
    %v171 = vlaneseq
    %v172 = vshrl.u32 %v171, 7
    %v173 = vsub.s32 3, %v172
    %v174 = vrot.slane %v157, %v173
    %179 = vmatprep.subr.mxu0 %v94
    %180 = vmatpush1.msra.mxu0 %v93
    %181 = vmatprep.subr.mxu0 %v98
    %182 = vmatpush1.msra.mxu0 %v97
    %183 = vmatprep.subr.mxu0 %v102
    %184 = vmatpush1.msra.mxu0 %v101
    %185 = vmatprep.subr.mxu0 %v106
    %186 = vmatpush1.msra.mxu0 %v105
    %187 = vmatprep.subr.mxu0 %v110
    %188 = vmatpush1.msra.mxu0 %v109
    %189 = vmatprep.subr.mxu0 %v114
    %190 = vmatpush1.msra.mxu0 %v113
    %191 = vmatprep.subr.mxu0 %v118
    %192 = vmatpush1.msra.mxu0 %v117
    %193 = vmatprep.subr.mxu0 %v122
    %194 = vmatpush1.msra.mxu0 %v121
    %195 = vmatprep.subr.mxu0 %v126
    %196 = vmatpush1.msra.mxu0 %v125
    %197 = vmatprep.subr.mxu0 %v130
    %198 = vmatpush1.msra.mxu0 %v129
    %199 = vmatprep.subr.mxu0 %v134
    %200 = vmatpush1.msra.mxu0 %v133
    %201 = vmatprep.subr.mxu0 %v138
    %202 = vmatpush1.msra.mxu0 %v137
    %203 = vmatprep.subr.mxu0 %v142
    %204 = vmatpush1.msra.mxu0 %v141
    %205 = vmatprep.subr.mxu0 %v146
    %206 = vmatpush1.msra.mxu0 %v145
    %207 = vmatprep.subr.mxu0 %v150
    %208 = vmatpush1.msra.mxu0 %v149
    %209 = vmatprep.subr.mxu0 %v154
    %210 = vmatpush1.msra.mxu0 %v153
    %211 = vmatprep.subr.mxu0 0.0
    %212 = vmatpush1.msra.mxu0 0.0
    %213 = vmatprep.subr.mxu0 0.0
    %214 = vmatpush1.msra.mxu0 0.0
    %215 = vmatprep.subr.mxu0 0.0
    %216 = vmatpush1.msra.mxu0 0.0
    %217 = vmatprep.subr.mxu0 0.0
    %218 = vmatpush1.msra.mxu0 0.0
    %219 = vmatprep.subr.mxu0 0.0
    %220 = vmatpush1.msra.mxu0 0.0
    %221 = vmatprep.subr.mxu0 0.0
    %222 = vmatpush1.msra.mxu0 0.0
    %223 = vmatprep.subr.mxu0 0.0
    %224 = vmatpush1.msra.mxu0 0.0
    %225 = vmatprep.subr.mxu0 0.0
    %226 = vmatpush1.msra.mxu0 0.0
    %227 = vmatprep.subr.mxu0 0.0
    %228 = vmatpush1.msra.mxu0 0.0
    %229 = vmatprep.subr.mxu0 0.0
    %230 = vmatpush1.msra.mxu0 0.0
    %231 = vmatprep.subr.mxu0 0.0
    %232 = vmatpush1.msra.mxu0 0.0
    %233 = vmatprep.subr.mxu0 0.0
    %234 = vmatpush1.msra.mxu0 0.0
    %235 = vmatprep.subr.mxu0 0.0
    %236 = vmatpush1.msra.mxu0 0.0
    %237 = vmatprep.subr.mxu0 0.0
    %238 = vmatpush1.msra.mxu0 0.0
    %239 = vmatprep.subr.mxu0 0.0
    %240 = vmatpush1.msra.mxu0 0.0
    %241 = vmatprep.subr.mxu0 0.0
    %242 = vmatpush1.msra.mxu0 0.0
    %243 = vmatprep.mubr.f32.mxu0 0.0
    %244 = vmatmul.mubr.f32.gmra.mrb[0].mxu0 %v85
    %v245 = vpop.f32.mrb[0].mxu0
    %v246 = vadd.f32 %v162, %v245
    %v247 = vpop.f32.mrb[0].mxu0
    %v248 = vadd.f32 %v166, %v247
    %249 = vmatprep.mubr.f32.mxu0 0.0
    %250 = vmatmul.mubr.f32.gmra.mrb[0].mxu0 %v86
    %v251 = vpop.f32.mrb[0].mxu0
    %v252 = vadd.f32 %v162, %v251
    %v253 = vpop.f32.mrb[0].mxu0
    %v254 = vadd.f32 %v166, %v253
    %255 = vmatprep.mubr.f32.mxu0 0.0
    %256 = vmatmul.mubr.f32.gmra.mrb[0].mxu0 %v87
    %v257 = vpop.f32.mrb[0].mxu0
    %v258 = vadd.f32 %v162, %v257
    %v259 = vpop.f32.mrb[0].mxu0
    %v260 = vadd.f32 %v166, %v259
    %261 = vmatprep.mubr.f32.mxu0 0.0
    %262 = vmatmul.mubr.f32.gmra.mrb[0].mxu0 %v88
    %v263 = vpop.f32.mrb[0].mxu0
    %v264 = vadd.f32 %v162, %v263
    %v265 = vpop.f32.mrb[0].mxu0
    %v266 = vadd.f32 %v166, %v265
    %267 = vmatprep.mubr.f32.mxu0 0.0
    %268 = vmatmul.mubr.f32.gmra.mrb[0].mxu0 %v89
    %v269 = vpop.f32.mrb[0].mxu0
    %v270 = vadd.f32 %v162, %v269
    %v271 = vpop.f32.mrb[0].mxu0
    %v272 = vadd.f32 %v166, %v271
    %273 = vmatprep.mubr.f32.mxu0 0.0
    %274 = vmatmul.mubr.f32.gmra.mrb[0].mxu0 %v90
    %v275 = vpop.f32.mrb[0].mxu0
    %v276 = vadd.f32 %v162, %v275
    %v277 = vpop.f32.mrb[0].mxu0
    %v278 = vadd.f32 %v166, %v277
    %279 = vmatprep.mubr.f32.mxu0 0.0
    %280 = vmatmul.mubr.f32.gmra.mrb[0].mxu0 %v91
    %v281 = vpop.f32.mrb[0].mxu0
    %v282 = vadd.f32 %v162, %v281
    %v283 = vpop.f32.mrb[0].mxu0
    %v284 = vadd.f32 %v166, %v283
    %285 = vmatprep.mubr.f32.mxu0 0.0
    %286 = vmatmul.mubr.f32.gmra.mrb[0].mxu0 %v92
    %v287 = vpop.f32.mrb[0].mxu0
    %v288 = vadd.f32 %v162, %v287
    %v289 = vpop.f32.mrb[0].mxu0
    %v290 = vadd.f32 %v166, %v289
    %291 = vdwg.mxu0
    %292 = vmatprep.subr.mxu0 %v96
    %293 = vmatpush1.msra.mxu0 %v95
    %294 = vmatprep.subr.mxu0 %v100
    %295 = vmatpush1.msra.mxu0 %v99
    %296 = vmatprep.subr.mxu0 %v104
    %297 = vmatpush1.msra.mxu0 %v103
    %298 = vmatprep.subr.mxu0 %v108
    %299 = vmatpush1.msra.mxu0 %v107
    %300 = vmatprep.subr.mxu0 %v112
    %301 = vmatpush1.msra.mxu0 %v111
    %302 = vmatprep.subr.mxu0 %v116
    %303 = vmatpush1.msra.mxu0 %v115
    %304 = vmatprep.subr.mxu0 %v120
    %305 = vmatpush1.msra.mxu0 %v119
    %306 = vmatprep.subr.mxu0 %v124
    %307 = vmatpush1.msra.mxu0 %v123
    %308 = vmatprep.subr.mxu0 %v128
    %309 = vmatpush1.msra.mxu0 %v127
    %310 = vmatprep.subr.mxu0 %v132
    %311 = vmatpush1.msra.mxu0 %v131
    %312 = vmatprep.subr.mxu0 %v136
    %313 = vmatpush1.msra.mxu0 %v135
    %314 = vmatprep.subr.mxu0 %v140
    %315 = vmatpush1.msra.mxu0 %v139
    %316 = vmatprep.subr.mxu0 %v144
    %317 = vmatpush1.msra.mxu0 %v143
    %318 = vmatprep.subr.mxu0 %v148
    %319 = vmatpush1.msra.mxu0 %v147
    %320 = vmatprep.subr.mxu0 %v152
    %321 = vmatpush1.msra.mxu0 %v151
    %322 = vmatprep.subr.mxu0 %v156
    %323 = vmatpush1.msra.mxu0 %v155
    %324 = vmatprep.subr.mxu0 0.0
    %325 = vmatpush1.msra.mxu0 0.0
    %326 = vmatprep.subr.mxu0 0.0
    %327 = vmatpush1.msra.mxu0 0.0
    %328 = vmatprep.subr.mxu0 0.0
    %329 = vmatpush1.msra.mxu0 0.0
    %330 = vmatprep.subr.mxu0 0.0
    %331 = vmatpush1.msra.mxu0 0.0
    %332 = vmatprep.subr.mxu0 0.0
    %333 = vmatpush1.msra.mxu0 0.0
    %334 = vmatprep.subr.mxu0 0.0
    %335 = vmatpush1.msra.mxu0 0.0
    %336 = vmatprep.subr.mxu0 0.0
    %337 = vmatpush1.msra.mxu0 0.0
    %338 = vmatprep.subr.mxu0 0.0
    %339 = vmatpush1.msra.mxu0 0.0
    %340 = vmatprep.subr.mxu0 0.0
    %341 = vmatpush1.msra.mxu0 0.0
    %342 = vmatprep.subr.mxu0 0.0
    %343 = vmatpush1.msra.mxu0 0.0
    %344 = vmatprep.subr.mxu0 0.0
    %345 = vmatpush1.msra.mxu0 0.0
    %346 = vmatprep.subr.mxu0 0.0
    %347 = vmatpush1.msra.mxu0 0.0
    %348 = vmatprep.subr.mxu0 0.0
    %349 = vmatpush1.msra.mxu0 0.0
    %350 = vmatprep.subr.mxu0 0.0
    %351 = vmatpush1.msra.mxu0 0.0
    %352 = vmatprep.subr.mxu0 0.0
    %353 = vmatpush1.msra.mxu0 0.0
    %354 = vmatprep.subr.mxu0 0.0
    %355 = vmatpush1.msra.mxu0 0.0
    %356 = vmatprep.mubr.f32.mxu0 0.0
    %357 = vmatmul.mubr.f32.gmra.mrb[0].mxu0 %v85
    %v358 = vpop.f32.mrb[0].mxu0
    %v359 = vadd.f32 %v170, %v358
    %v360 = vpop.f32.mrb[0].mxu0
    %v361 = vadd.f32 %v174, %v360
    %362 = vmatprep.mubr.f32.mxu0 0.0
    %363 = vmatmul.mubr.f32.gmra.mrb[0].mxu0 %v86
    %v364 = vpop.f32.mrb[0].mxu0
    %v365 = vadd.f32 %v170, %v364
    %v366 = vpop.f32.mrb[0].mxu0
    %v367 = vadd.f32 %v174, %v366
    %368 = vmatprep.mubr.f32.mxu0 0.0
    %369 = vmatmul.mubr.f32.gmra.mrb[0].mxu0 %v87
    %v370 = vpop.f32.mrb[0].mxu0
    %v371 = vadd.f32 %v170, %v370
    %v372 = vpop.f32.mrb[0].mxu0
    %v373 = vadd.f32 %v174, %v372
    %374 = vmatprep.mubr.f32.mxu0 0.0
    %375 = vmatmul.mubr.f32.gmra.mrb[0].mxu0 %v88
    %v376 = vpop.f32.mrb[0].mxu0
    %v377 = vadd.f32 %v170, %v376
    %v378 = vpop.f32.mrb[0].mxu0
    %v379 = vadd.f32 %v174, %v378
    %380 = vmatprep.mubr.f32.mxu0 0.0
    %381 = vmatmul.mubr.f32.gmra.mrb[0].mxu0 %v89
    %v382 = vpop.f32.mrb[0].mxu0
    %v383 = vadd.f32 %v170, %v382
    %v384 = vpop.f32.mrb[0].mxu0
    %v385 = vadd.f32 %v174, %v384
    %386 = vmatprep.mubr.f32.mxu0 0.0
    %387 = vmatmul.mubr.f32.gmra.mrb[0].mxu0 %v90
    %v388 = vpop.f32.mrb[0].mxu0
    %v389 = vadd.f32 %v170, %v388
    %v390 = vpop.f32.mrb[0].mxu0
    %v391 = vadd.f32 %v174, %v390
    %392 = vmatprep.mubr.f32.mxu0 0.0
    %393 = vmatmul.mubr.f32.gmra.mrb[0].mxu0 %v91
    %v394 = vpop.f32.mrb[0].mxu0
    %v395 = vadd.f32 %v170, %v394
    %v396 = vpop.f32.mrb[0].mxu0
    %v397 = vadd.f32 %v174, %v396
    %398 = vmatprep.mubr.f32.mxu0 0.0
    %399 = vmatmul.mubr.f32.gmra.mrb[0].mxu0 %v92
    %v400 = vpop.f32.mrb[0].mxu0
    %v401 = vadd.f32 %v170, %v400
    %v402 = vpop.f32.mrb[0].mxu0
    %v403 = vadd.f32 %v174, %v402
    %404 = vdwg.mxu0
    %405 = vst [vmem:[#allocation4] sm:$0xff] %v246
    %406 = vst [vmem:[#allocation4 + $0x8] sm:$0xff] %v248
    %407 = vst [vmem:[#allocation4 + $0x10] sm:$0xff] %v359
    %408 = vst [vmem:[#allocation4 + $0x18] sm:$0xff] %v361
    %409 = vst [vmem:[#allocation4 + $0x20] sm:$0xff] %v252
    %410 = vst [vmem:[#allocation4 + $0x28] sm:$0xff] %v254
    %411 = vst [vmem:[#allocation4 + $0x30] sm:$0xff] %v365
    %412 = vst [vmem:[#allocation4 + $0x38] sm:$0xff] %v367
    %413 = vst [vmem:[#allocation4 + $0x40] sm:$0xff] %v258
    %414 = vst [vmem:[#allocation4 + $0x48] sm:$0xff] %v260
    %415 = vst [vmem:[#allocation4 + $0x50] sm:$0xff] %v371
    %416 = vst [vmem:[#allocation4 + $0x58] sm:$0xff] %v373
    %417 = vst [vmem:[#allocation4 + $0x60] sm:$0xff] %v264
    %418 = vst [vmem:[#allocation4 + $0x68] sm:$0xff] %v266
    %419 = vst [vmem:[#allocation4 + $0x70] sm:$0xff] %v377
    %420 = vst [vmem:[#allocation4 + $0x78] sm:$0xff] %v379
    %421 = vst [vmem:[#allocation4 + $0x80] sm:$0xff] %v270
    %422 = vst [vmem:[#allocation4 + $0x88] sm:$0xff] %v272
    %423 = vst [vmem:[#allocation4 + $0x90] sm:$0xff] %v383
    %424 = vst [vmem:[#allocation4 + $0x98] sm:$0xff] %v385
    %425 = vst [vmem:[#allocation4 + $0xa0] sm:$0xff] %v276
    %426 = vst [vmem:[#allocation4 + $0xa8] sm:$0xff] %v278
    %427 = vst [vmem:[#allocation4 + $0xb0] sm:$0xff] %v389
    %428 = vst [vmem:[#allocation4 + $0xb8] sm:$0xff] %v391
    %429 = vst [vmem:[#allocation4 + $0xc0] sm:$0xff] %v282
    %430 = vst [vmem:[#allocation4 + $0xc8] sm:$0xff] %v284
    %431 = vst [vmem:[#allocation4 + $0xd0] sm:$0xff] %v395
    %432 = vst [vmem:[#allocation4 + $0xd8] sm:$0xff] %v397
    %433 = vst [vmem:[#allocation4 + $0xe0] sm:$0xff] %v288
    %434 = vst [vmem:[#allocation4 + $0xe8] sm:$0xff] %v290
    %435 = vst [vmem:[#allocation4 + $0xf0] sm:$0xff] %v401
    %436 = vst [vmem:[#allocation4 + $0xf8] sm:$0xff] %v403
    %v437 = vld [vmem:[#allocation10] sm:$0xff]
    %v438 = vld [vmem:[#allocation10 + $0x8] sm:$0xff]
    %v439 = vld [vmem:[#allocation10 + $0x10] sm:$0xff]
    %v440 = vld [vmem:[#allocation10 + $0x18] sm:$0xff]
    %v441 = vld [vmem:[#allocation10 + $0x20] sm:$0xff]
    %v442 = vld [vmem:[#allocation10 + $0x28] sm:$0xff]
    %v443 = vld [vmem:[#allocation10 + $0x30] sm:$0xff]
    %v444 = vld [vmem:[#allocation10 + $0x38] sm:$0xff]
    %v445 = vld [vmem:[#allocation10 + $0x40] sm:$0xff]
    %v446 = vld [vmem:[#allocation10 + $0x48] sm:$0xff]
    %v447 = vld [vmem:[#allocation10 + $0x50] sm:$0xff]
    %v448 = vld [vmem:[#allocation10 + $0x58] sm:$0xff]
    %v449 = vld [vmem:[#allocation10 + $0x60] sm:$0xff]
    %v450 = vld [vmem:[#allocation10 + $0x68] sm:$0xff]
    %v451 = vld [vmem:[#allocation10 + $0x70] sm:$0xff]
    %v452 = vld [vmem:[#allocation10 + $0x78] sm:$0xff]
    %v453 = vld [vmem:[#allocation10 + $0x80] sm:$0xff]
    %v454 = vld [vmem:[#allocation10 + $0x88] sm:$0xff]
    %v455 = vld [vmem:[#allocation10 + $0x90] sm:$0xff]
    %v456 = vld [vmem:[#allocation10 + $0x98] sm:$0xff]
    %v457 = vld [vmem:[#allocation10 + $0xa0] sm:$0xff]
    %v458 = vld [vmem:[#allocation10 + $0xa8] sm:$0xff]
    %v459 = vld [vmem:[#allocation10 + $0xb0] sm:$0xff]
    %v460 = vld [vmem:[#allocation10 + $0xb8] sm:$0xff]
    %v461 = vld [vmem:[#allocation10 + $0xc0] sm:$0xff]
    %v462 = vld [vmem:[#allocation10 + $0xc8] sm:$0xff]
    %v463 = vld [vmem:[#allocation10 + $0xd0] sm:$0xff]
    %v464 = vld [vmem:[#allocation10 + $0xd8] sm:$0xff]
    %v465 = vld [vmem:[#allocation10 + $0xe0] sm:$0xff]
    %v466 = vld [vmem:[#allocation10 + $0xe8] sm:$0xff]
    %v467 = vld [vmem:[#allocation10 + $0xf0] sm:$0xff]
    %v468 = vld [vmem:[#allocation10 + $0xf8] sm:$0xff]
    %v469 = vld [vmem:[#allocation10 + $0x100] sm:$0xff]
    %v470 = vld [vmem:[#allocation10 + $0x108] sm:$0xff]
    %v471 = vld [vmem:[#allocation10 + $0x110] sm:$0xff]
    %v472 = vld [vmem:[#allocation10 + $0x118] sm:$0xff]
    %v473 = vld [vmem:[#allocation10 + $0x120] sm:$0xff]
    %v474 = vld [vmem:[#allocation10 + $0x128] sm:$0xff]
    %v475 = vld [vmem:[#allocation10 + $0x130] sm:$0xff]
    %v476 = vld [vmem:[#allocation10 + $0x138] sm:$0xff]
    %v477 = vld [vmem:[#allocation10 + $0x140] sm:$0xff]
    %v478 = vld [vmem:[#allocation10 + $0x148] sm:$0xff]
    %v479 = vld [vmem:[#allocation10 + $0x150] sm:$0xff]
    %v480 = vld [vmem:[#allocation10 + $0x158] sm:$0xff]
    %v481 = vld [vmem:[#allocation10 + $0x160] sm:$0xff]
    %v482 = vld [vmem:[#allocation10 + $0x168] sm:$0xff]
    %v483 = vld [vmem:[#allocation10 + $0x170] sm:$0xff]
    %v484 = vld [vmem:[#allocation10 + $0x178] sm:$0xff]
    %v485 = vld [vmem:[#allocation10 + $0x180] sm:$0xff]
    %v486 = vld [vmem:[#allocation10 + $0x188] sm:$0xff]
    %v487 = vld [vmem:[#allocation10 + $0x190] sm:$0xff]
    %v488 = vld [vmem:[#allocation10 + $0x198] sm:$0xff]
    %v489 = vld [vmem:[#allocation10 + $0x1a0] sm:$0xff]
    %v490 = vld [vmem:[#allocation10 + $0x1a8] sm:$0xff]
    %v491 = vld [vmem:[#allocation10 + $0x1b0] sm:$0xff]
    %v492 = vld [vmem:[#allocation10 + $0x1b8] sm:$0xff]
    %v493 = vld [vmem:[#allocation10 + $0x1c0] sm:$0xff]
    %v494 = vld [vmem:[#allocation10 + $0x1c8] sm:$0xff]
    %v495 = vld [vmem:[#allocation10 + $0x1d0] sm:$0xff]
    %v496 = vld [vmem:[#allocation10 + $0x1d8] sm:$0xff]
    %v497 = vld [vmem:[#allocation10 + $0x1e0] sm:$0xff]
    %v498 = vld [vmem:[#allocation10 + $0x1e8] sm:$0xff]
    %v499 = vld [vmem:[#allocation10 + $0x1f0] sm:$0xff]
    %v500 = vld [vmem:[#allocation10 + $0x1f8] sm:$0xff]
    %v501 = vld [vmem:[#allocation2] sm:$0xff]
    %v502 = vld [vmem:[#allocation3] sm:$0xff]
    %v503 = vld [vmem:[#allocation4] sm:$0xff]
    %v504 = vld [vmem:[#allocation4 + $0x8] sm:$0xff]
    %v505 = vld [vmem:[#allocation4 + $0x10] sm:$0xff]
    %v506 = vld [vmem:[#allocation4 + $0x18] sm:$0xff]
    %507 = vmatprep.subr.mxu0 %v438
    %508 = vmatpush1.msra.mxu0 %v437
    %509 = vmatprep.subr.mxu0 %v442
    %510 = vmatpush1.msra.mxu0 %v441
    %511 = vmatprep.subr.mxu0 %v446
    %512 = vmatpush1.msra.mxu0 %v445
    %513 = vmatprep.subr.mxu0 %v450
    %514 = vmatpush1.msra.mxu0 %v449
    %515 = vmatprep.subr.mxu0 %v454
    %516 = vmatpush1.msra.mxu0 %v453
    %517 = vmatprep.subr.mxu0 %v458
    %518 = vmatpush1.msra.mxu0 %v457
    %519 = vmatprep.subr.mxu0 %v462
    %520 = vmatpush1.msra.mxu0 %v461
    %521 = vmatprep.subr.mxu0 %v466
    %522 = vmatpush1.msra.mxu0 %v465
    %523 = vmatprep.subr.mxu0 %v470
    %524 = vmatpush1.msra.mxu0 %v469
    %525 = vmatprep.subr.mxu0 %v474
    %526 = vmatpush1.msra.mxu0 %v473
    %527 = vmatprep.subr.mxu0 %v478
    %528 = vmatpush1.msra.mxu0 %v477
    %529 = vmatprep.subr.mxu0 %v482
    %530 = vmatpush1.msra.mxu0 %v481
    %531 = vmatprep.subr.mxu0 %v486
    %532 = vmatpush1.msra.mxu0 %v485
    %533 = vmatprep.subr.mxu0 %v490
    %534 = vmatpush1.msra.mxu0 %v489
    %535 = vmatprep.subr.mxu0 %v494
    %536 = vmatpush1.msra.mxu0 %v493
    %537 = vmatprep.subr.mxu0 %v498
    %538 = vmatpush1.msra.mxu0 %v497
    %539 = vmatprep.subr.mxu0 0.0
    %540 = vmatpush1.msra.mxu0 0.0
    %541 = vmatprep.subr.mxu0 0.0
    %542 = vmatpush1.msra.mxu0 0.0
    %543 = vmatprep.subr.mxu0 0.0
    %544 = vmatpush1.msra.mxu0 0.0
    %545 = vmatprep.subr.mxu0 0.0
    %546 = vmatpush1.msra.mxu0 0.0
    %547 = vmatprep.subr.mxu0 0.0
    %548 = vmatpush1.msra.mxu0 0.0
    %549 = vmatprep.subr.mxu0 0.0
    %550 = vmatpush1.msra.mxu0 0.0
    %551 = vmatprep.subr.mxu0 0.0
    %552 = vmatpush1.msra.mxu0 0.0
    %553 = vmatprep.subr.mxu0 0.0
    %554 = vmatpush1.msra.mxu0 0.0
    %555 = vmatprep.subr.mxu0 0.0
    %556 = vmatpush1.msra.mxu0 0.0
    %557 = vmatprep.subr.mxu0 0.0
    %558 = vmatpush1.msra.mxu0 0.0
    %559 = vmatprep.subr.mxu0 0.0
    %560 = vmatpush1.msra.mxu0 0.0
    %561 = vmatprep.subr.mxu0 0.0
    %562 = vmatpush1.msra.mxu0 0.0
    %563 = vmatprep.subr.mxu0 0.0
    %564 = vmatpush1.msra.mxu0 0.0
    %565 = vmatprep.subr.mxu0 0.0
    %566 = vmatpush1.msra.mxu0 0.0
    %567 = vmatprep.subr.mxu0 0.0
    %568 = vmatpush1.msra.mxu0 0.0
    %569 = vmatprep.subr.mxu0 0.0
    %570 = vmatpush1.msra.mxu0 0.0
    %571 = vmatprep.mubr.f32.mxu0 0.0
    %572 = vmatmul.mubr.f32.gmra.mrb[0].mxu0 %v501
    %v573 = vpop.f32.mrb[0].mxu0
    %v574 = vadd.f32 0.0, %v573
    %v575 = vpop.f32.mrb[0].mxu0
    %v576 = vadd.f32 0.0, %v575
    %577 = vdwg.mxu0
    %578 = vmatprep.subr.mxu0 %v440
    %579 = vmatpush1.msra.mxu0 %v439
    %580 = vmatprep.subr.mxu0 %v444
    %581 = vmatpush1.msra.mxu0 %v443
    %582 = vmatprep.subr.mxu0 %v448
    %583 = vmatpush1.msra.mxu0 %v447
    %584 = vmatprep.subr.mxu0 %v452
    %585 = vmatpush1.msra.mxu0 %v451
    %586 = vmatprep.subr.mxu0 %v456
    %587 = vmatpush1.msra.mxu0 %v455
    %588 = vmatprep.subr.mxu0 %v460
    %589 = vmatpush1.msra.mxu0 %v459
    %590 = vmatprep.subr.mxu0 %v464
    %591 = vmatpush1.msra.mxu0 %v463
    %592 = vmatprep.subr.mxu0 %v468
    %593 = vmatpush1.msra.mxu0 %v467
    %594 = vmatprep.subr.mxu0 %v472
    %595 = vmatpush1.msra.mxu0 %v471
    %596 = vmatprep.subr.mxu0 %v476
    %597 = vmatpush1.msra.mxu0 %v475
    %598 = vmatprep.subr.mxu0 %v480
    %599 = vmatpush1.msra.mxu0 %v479
    %600 = vmatprep.subr.mxu0 %v484
    %601 = vmatpush1.msra.mxu0 %v483
    %602 = vmatprep.subr.mxu0 %v488
    %603 = vmatpush1.msra.mxu0 %v487
    %604 = vmatprep.subr.mxu0 %v492
    %605 = vmatpush1.msra.mxu0 %v491
    %606 = vmatprep.subr.mxu0 %v496
    %607 = vmatpush1.msra.mxu0 %v495
    %608 = vmatprep.subr.mxu0 %v500
    %609 = vmatpush1.msra.mxu0 %v499
    %610 = vmatprep.subr.mxu0 0.0
    %611 = vmatpush1.msra.mxu0 0.0
    %612 = vmatprep.subr.mxu0 0.0
    %613 = vmatpush1.msra.mxu0 0.0
    %614 = vmatprep.subr.mxu0 0.0
    %615 = vmatpush1.msra.mxu0 0.0
    %616 = vmatprep.subr.mxu0 0.0
    %617 = vmatpush1.msra.mxu0 0.0
    %618 = vmatprep.subr.mxu0 0.0
    %619 = vmatpush1.msra.mxu0 0.0
    %620 = vmatprep.subr.mxu0 0.0
    %621 = vmatpush1.msra.mxu0 0.0
    %622 = vmatprep.subr.mxu0 0.0
    %623 = vmatpush1.msra.mxu0 0.0
    %624 = vmatprep.subr.mxu0 0.0
    %625 = vmatpush1.msra.mxu0 0.0
    %626 = vmatprep.subr.mxu0 0.0
    %627 = vmatpush1.msra.mxu0 0.0
    %628 = vmatprep.subr.mxu0 0.0
    %629 = vmatpush1.msra.mxu0 0.0
    %630 = vmatprep.subr.mxu0 0.0
    %631 = vmatpush1.msra.mxu0 0.0
    %632 = vmatprep.subr.mxu0 0.0
    %633 = vmatpush1.msra.mxu0 0.0
    %634 = vmatprep.subr.mxu0 0.0
    %635 = vmatpush1.msra.mxu0 0.0
    %636 = vmatprep.subr.mxu0 0.0
    %637 = vmatpush1.msra.mxu0 0.0
    %638 = vmatprep.subr.mxu0 0.0
    %639 = vmatpush1.msra.mxu0 0.0
    %640 = vmatprep.subr.mxu0 0.0
    %641 = vmatpush1.msra.mxu0 0.0
    %642 = vmatprep.mubr.f32.mxu0 0.0
    %643 = vmatmul.mubr.f32.gmra.mrb[0].mxu0 %v501
    %v644 = vpop.f32.mrb[0].mxu0
    %v645 = vadd.f32 0.0, %v644
    %v646 = vpop.f32.mrb[0].mxu0
    %v647 = vadd.f32 0.0, %v646
    %648 = vdwg.mxu0
    %v649 = vadd.f32 %v503, %v574
    %v650 = vadd.f32 %v504, %v576
    %v651 = vadd.f32 %v505, %v645
    %v652 = vadd.f32 %v506, %v647
    %v653 = vxor.u32 %v649, 2147483648
    %v654 = vmul.f32 %v653, 1.442695
    %v655 = vpow.pop %v654
    %v656 = vadd.f32 %v655, 1.0
    %v657 = vrcp.pop %v656
    %v658 = vmul.f32 1.0, %v657
    %v659 = vxor.u32 %v650, 2147483648
    %v660 = vmul.f32 %v659, 1.442695
    %v661 = vpow.pop %v660
    %v662 = vadd.f32 %v661, 1.0
    %v663 = vrcp.pop %v662
    %v664 = vmul.f32 1.0, %v663
    %v665 = vtanh.pop %v651
    %v666 = vxor.u32 %v652, 2147483648
    %v667 = vmul.f32 %v666, 1.442695
    %v668 = vpow.pop %v667
    %v669 = vadd.f32 %v668, 1.0
    %v670 = vrcp.pop %v669
    %v671 = vmul.f32 1.0, %v670
    %v672 = vmul.f32 %v664, %v502
    %v673 = vmul.f32 %v658, %v665
    %v674 = vadd.f32 %v672, %v673
    %v675 = vtanh.pop %v674
    %v676 = vmul.f32 %v671, %v675
    %v677 = vld [vmem:[#allocation4 + $0x20] sm:$0xff]
    %v678 = vld [vmem:[#allocation4 + $0x28] sm:$0xff]
    %v679 = vld [vmem:[#allocation4 + $0x30] sm:$0xff]
    %v680 = vld [vmem:[#allocation4 + $0x38] sm:$0xff]
    %681 = vmatprep.subr.mxu0 %v438
    %682 = vmatpush1.msra.mxu0 %v437
    %683 = vmatprep.subr.mxu0 %v442
    %684 = vmatpush1.msra.mxu0 %v441
    %685 = vmatprep.subr.mxu0 %v446
    %686 = vmatpush1.msra.mxu0 %v445
    %687 = vmatprep.subr.mxu0 %v450
    %688 = vmatpush1.msra.mxu0 %v449
    %689 = vmatprep.subr.mxu0 %v454
    %690 = vmatpush1.msra.mxu0 %v453
    %691 = vmatprep.subr.mxu0 %v458
    %692 = vmatpush1.msra.mxu0 %v457
    %693 = vmatprep.subr.mxu0 %v462
    %694 = vmatpush1.msra.mxu0 %v461
    %695 = vmatprep.subr.mxu0 %v466
    %696 = vmatpush1.msra.mxu0 %v465
    %697 = vmatprep.subr.mxu0 %v470
    %698 = vmatpush1.msra.mxu0 %v469
    %699 = vmatprep.subr.mxu0 %v474
    %700 = vmatpush1.msra.mxu0 %v473
    %701 = vmatprep.subr.mxu0 %v478
    %702 = vmatpush1.msra.mxu0 %v477
    %703 = vmatprep.subr.mxu0 %v482
    %704 = vmatpush1.msra.mxu0 %v481
    %705 = vmatprep.subr.mxu0 %v486
    %706 = vmatpush1.msra.mxu0 %v485
    %707 = vmatprep.subr.mxu0 %v490
    %708 = vmatpush1.msra.mxu0 %v489
    %709 = vmatprep.subr.mxu0 %v494
    %710 = vmatpush1.msra.mxu0 %v493
    %711 = vmatprep.subr.mxu0 %v498
    %712 = vmatpush1.msra.mxu0 %v497
    %713 = vmatprep.subr.mxu0 0.0
    %714 = vmatpush1.msra.mxu0 0.0
    %715 = vmatprep.subr.mxu0 0.0
    %716 = vmatpush1.msra.mxu0 0.0
    %717 = vmatprep.subr.mxu0 0.0
    %718 = vmatpush1.msra.mxu0 0.0
    %719 = vmatprep.subr.mxu0 0.0
    %720 = vmatpush1.msra.mxu0 0.0
    %721 = vmatprep.subr.mxu0 0.0
    %722 = vmatpush1.msra.mxu0 0.0
    %723 = vmatprep.subr.mxu0 0.0
    %724 = vmatpush1.msra.mxu0 0.0
    %725 = vmatprep.subr.mxu0 0.0
    %726 = vmatpush1.msra.mxu0 0.0
    %727 = vmatprep.subr.mxu0 0.0
    %728 = vmatpush1.msra.mxu0 0.0
    %729 = vmatprep.subr.mxu0 0.0
    %730 = vmatpush1.msra.mxu0 0.0
    %731 = vmatprep.subr.mxu0 0.0
    %732 = vmatpush1.msra.mxu0 0.0
    %733 = vmatprep.subr.mxu0 0.0
    %734 = vmatpush1.msra.mxu0 0.0
    %735 = vmatprep.subr.mxu0 0.0
    %736 = vmatpush1.msra.mxu0 0.0
    %737 = vmatprep.subr.mxu0 0.0
    %738 = vmatpush1.msra.mxu0 0.0
    %739 = vmatprep.subr.mxu0 0.0
    %740 = vmatpush1.msra.mxu0 0.0
    %741 = vmatprep.subr.mxu0 0.0
    %742 = vmatpush1.msra.mxu0 0.0
    %743 = vmatprep.subr.mxu0 0.0
    %744 = vmatpush1.msra.mxu0 0.0
    %745 = vmatprep.mubr.f32.mxu0 0.0
    %746 = vmatmul.mubr.f32.gmra.mrb[0].mxu0 %v676
    %v747 = vpop.f32.mrb[0].mxu0
    %v748 = vadd.f32 0.0, %v747
    %v749 = vpop.f32.mrb[0].mxu0
    %v750 = vadd.f32 0.0, %v749
    %751 = vdwg.mxu0
    %752 = vmatprep.subr.mxu0 %v440
    %753 = vmatpush1.msra.mxu0 %v439
    %754 = vmatprep.subr.mxu0 %v444
    %755 = vmatpush1.msra.mxu0 %v443
    %756 = vmatprep.subr.mxu0 %v448
    %757 = vmatpush1.msra.mxu0 %v447
    %758 = vmatprep.subr.mxu0 %v452
    %759 = vmatpush1.msra.mxu0 %v451
    %760 = vmatprep.subr.mxu0 %v456
    %761 = vmatpush1.msra.mxu0 %v455
    %762 = vmatprep.subr.mxu0 %v460
    %763 = vmatpush1.msra.mxu0 %v459
    %764 = vmatprep.subr.mxu0 %v464
    %765 = vmatpush1.msra.mxu0 %v463
    %766 = vmatprep.subr.mxu0 %v468
    %767 = vmatpush1.msra.mxu0 %v467
    %768 = vmatprep.subr.mxu0 %v472
    %769 = vmatpush1.msra.mxu0 %v471
    %770 = vmatprep.subr.mxu0 %v476
    %771 = vmatpush1.msra.mxu0 %v475
    %772 = vmatprep.subr.mxu0 %v480
    %773 = vmatpush1.msra.mxu0 %v479
    %774 = vmatprep.subr.mxu0 %v484
    %775 = vmatpush1.msra.mxu0 %v483
    %776 = vmatprep.subr.mxu0 %v488
    %777 = vmatpush1.msra.mxu0 %v487
    %778 = vmatprep.subr.mxu0 %v492
    %779 = vmatpush1.msra.mxu0 %v491
    %780 = vmatprep.subr.mxu0 %v496
    %781 = vmatpush1.msra.mxu0 %v495
    %782 = vmatprep.subr.mxu0 %v500
    %783 = vmatpush1.msra.mxu0 %v499
    %784 = vmatprep.subr.mxu0 0.0
    %785 = vmatpush1.msra.mxu0 0.0
    %786 = vmatprep.subr.mxu0 0.0
    %787 = vmatpush1.msra.mxu0 0.0
    %788 = vmatprep.subr.mxu0 0.0
    %789 = vmatpush1.msra.mxu0 0.0
    %790 = vmatprep.subr.mxu0 0.0
    %791 = vmatpush1.msra.mxu0 0.0
    %792 = vmatprep.subr.mxu0 0.0
    %793 = vmatpush1.msra.mxu0 0.0
    %794 = vmatprep.subr.mxu0 0.0
    %795 = vmatpush1.msra.mxu0 0.0
    %796 = vmatprep.subr.mxu0 0.0
    %797 = vmatpush1.msra.mxu0 0.0
    %798 = vmatprep.subr.mxu0 0.0
    %799 = vmatpush1.msra.mxu0 0.0
    %800 = vmatprep.subr.mxu0 0.0
    %801 = vmatpush1.msra.mxu0 0.0
    %802 = vmatprep.subr.mxu0 0.0
    %803 = vmatpush1.msra.mxu0 0.0
    %804 = vmatprep.subr.mxu0 0.0
    %805 = vmatpush1.msra.mxu0 0.0
    %806 = vmatprep.subr.mxu0 0.0
    %807 = vmatpush1.msra.mxu0 0.0
    %808 = vmatprep.subr.mxu0 0.0
    %809 = vmatpush1.msra.mxu0 0.0
    %810 = vmatprep.subr.mxu0 0.0
    %811 = vmatpush1.msra.mxu0 0.0
    %812 = vmatprep.subr.mxu0 0.0
    %813 = vmatpush1.msra.mxu0 0.0
    %814 = vmatprep.subr.mxu0 0.0
    %815 = vmatpush1.msra.mxu0 0.0
    %816 = vmatprep.mubr.f32.mxu0 0.0
    %817 = vmatmul.mubr.f32.gmra.mrb[0].mxu0 %v676
    %v818 = vpop.f32.mrb[0].mxu0
    %v819 = vadd.f32 0.0, %v818
    %v820 = vpop.f32.mrb[0].mxu0
    %v821 = vadd.f32 0.0, %v820
    %822 = vdwg.mxu0
    %v823 = vadd.f32 %v677, %v748
    %v824 = vadd.f32 %v678, %v750
    %v825 = vadd.f32 %v679, %v819
    %v826 = vadd.f32 %v680, %v821
    %v827 = vxor.u32 %v823, 2147483648
    %v828 = vmul.f32 %v827, 1.442695
    %v829 = vpow.pop %v828
    %v830 = vadd.f32 %v829, 1.0
    %v831 = vrcp.pop %v830
    %v832 = vmul.f32 1.0, %v831
    %v833 = vxor.u32 %v824, 2147483648
    %v834 = vmul.f32 %v833, 1.442695
    %v835 = vpow.pop %v834
    %v836 = vadd.f32 %v835, 1.0
    %v837 = vrcp.pop %v836
    %v838 = vmul.f32 1.0, %v837
    %v839 = vtanh.pop %v825
    %v840 = vxor.u32 %v826, 2147483648
    %v841 = vmul.f32 %v840, 1.442695
    %v842 = vpow.pop %v841
    %v843 = vadd.f32 %v842, 1.0
    %v844 = vrcp.pop %v843
    %v845 = vmul.f32 1.0, %v844
    %v846 = vmul.f32 %v838, %v674
    %v847 = vmul.f32 %v832, %v839
    %v848 = vadd.f32 %v846, %v847
    %v849 = vtanh.pop %v848
    %v850 = vmul.f32 %v845, %v849
    %v851 = vld [vmem:[#allocation4 + $0x40] sm:$0xff]
    %v852 = vld [vmem:[#allocation4 + $0x48] sm:$0xff]
    %v853 = vld [vmem:[#allocation4 + $0x50] sm:$0xff]
    %v854 = vld [vmem:[#allocation4 + $0x58] sm:$0xff]
    %855 = vmatprep.subr.mxu0 %v438
    %856 = vmatpush1.msra.mxu0 %v437
    %857 = vmatprep.subr.mxu0 %v442
    %858 = vmatpush1.msra.mxu0 %v441
    %859 = vmatprep.subr.mxu0 %v446
    %860 = vmatpush1.msra.mxu0 %v445
    %861 = vmatprep.subr.mxu0 %v450
    %862 = vmatpush1.msra.mxu0 %v449
    %863 = vmatprep.subr.mxu0 %v454
    %864 = vmatpush1.msra.mxu0 %v453
    %865 = vmatprep.subr.mxu0 %v458
    %866 = vmatpush1.msra.mxu0 %v457
    %867 = vmatprep.subr.mxu0 %v462
    %868 = vmatpush1.msra.mxu0 %v461
    %869 = vmatprep.subr.mxu0 %v466
    %870 = vmatpush1.msra.mxu0 %v465
    %871 = vmatprep.subr.mxu0 %v470
    %872 = vmatpush1.msra.mxu0 %v469
    %873 = vmatprep.subr.mxu0 %v474
    %874 = vmatpush1.msra.mxu0 %v473
    %875 = vmatprep.subr.mxu0 %v478
    %876 = vmatpush1.msra.mxu0 %v477
    %877 = vmatprep.subr.mxu0 %v482
    %878 = vmatpush1.msra.mxu0 %v481
    %879 = vmatprep.subr.mxu0 %v486
    %880 = vmatpush1.msra.mxu0 %v485
    %881 = vmatprep.subr.mxu0 %v490
    %882 = vmatpush1.msra.mxu0 %v489
    %883 = vmatprep.subr.mxu0 %v494
    %884 = vmatpush1.msra.mxu0 %v493
    %885 = vmatprep.subr.mxu0 %v498
    %886 = vmatpush1.msra.mxu0 %v497
    %887 = vmatprep.subr.mxu0 0.0
    %888 = vmatpush1.msra.mxu0 0.0
    %889 = vmatprep.subr.mxu0 0.0
    %890 = vmatpush1.msra.mxu0 0.0
    %891 = vmatprep.subr.mxu0 0.0
    %892 = vmatpush1.msra.mxu0 0.0
    %893 = vmatprep.subr.mxu0 0.0
    %894 = vmatpush1.msra.mxu0 0.0
    %895 = vmatprep.subr.mxu0 0.0
    %896 = vmatpush1.msra.mxu0 0.0
    %897 = vmatprep.subr.mxu0 0.0
    %898 = vmatpush1.msra.mxu0 0.0
    %899 = vmatprep.subr.mxu0 0.0
    %900 = vmatpush1.msra.mxu0 0.0
    %901 = vmatprep.subr.mxu0 0.0
    %902 = vmatpush1.msra.mxu0 0.0
    %903 = vmatprep.subr.mxu0 0.0
    %904 = vmatpush1.msra.mxu0 0.0
    %905 = vmatprep.subr.mxu0 0.0
    %906 = vmatpush1.msra.mxu0 0.0
    %907 = vmatprep.subr.mxu0 0.0
    %908 = vmatpush1.msra.mxu0 0.0
    %909 = vmatprep.subr.mxu0 0.0
    %910 = vmatpush1.msra.mxu0 0.0
    %911 = vmatprep.subr.mxu0 0.0
    %912 = vmatpush1.msra.mxu0 0.0
    %913 = vmatprep.subr.mxu0 0.0
    %914 = vmatpush1.msra.mxu0 0.0
    %915 = vmatprep.subr.mxu0 0.0
    %916 = vmatpush1.msra.mxu0 0.0
    %917 = vmatprep.subr.mxu0 0.0
    %918 = vmatpush1.msra.mxu0 0.0
    %919 = vmatprep.mubr.f32.mxu0 0.0
    %920 = vmatmul.mubr.f32.gmra.mrb[0].mxu0 %v850
    %v921 = vpop.f32.mrb[0].mxu0
    %v922 = vadd.f32 0.0, %v921
    %v923 = vpop.f32.mrb[0].mxu0
    %v924 = vadd.f32 0.0, %v923
    %925 = vdwg.mxu0
    %926 = vmatprep.subr.mxu0 %v440
    %927 = vmatpush1.msra.mxu0 %v439
    %928 = vmatprep.subr.mxu0 %v444
    %929 = vmatpush1.msra.mxu0 %v443
    %930 = vmatprep.subr.mxu0 %v448
    %931 = vmatpush1.msra.mxu0 %v447
    %932 = vmatprep.subr.mxu0 %v452
    %933 = vmatpush1.msra.mxu0 %v451
    %934 = vmatprep.subr.mxu0 %v456
    %935 = vmatpush1.msra.mxu0 %v455
    %936 = vmatprep.subr.mxu0 %v460
    %937 = vmatpush1.msra.mxu0 %v459
    %938 = vmatprep.subr.mxu0 %v464
    %939 = vmatpush1.msra.mxu0 %v463
    %940 = vmatprep.subr.mxu0 %v468
    %941 = vmatpush1.msra.mxu0 %v467
    %942 = vmatprep.subr.mxu0 %v472
    %943 = vmatpush1.msra.mxu0 %v471
    %944 = vmatprep.subr.mxu0 %v476
    %945 = vmatpush1.msra.mxu0 %v475
    %946 = vmatprep.subr.mxu0 %v480
    %947 = vmatpush1.msra.mxu0 %v479
    %948 = vmatprep.subr.mxu0 %v484
    %949 = vmatpush1.msra.mxu0 %v483
    %950 = vmatprep.subr.mxu0 %v488
    %951 = vmatpush1.msra.mxu0 %v487
    %952 = vmatprep.subr.mxu0 %v492
    %953 = vmatpush1.msra.mxu0 %v491
    %954 = vmatprep.subr.mxu0 %v496
    %955 = vmatpush1.msra.mxu0 %v495
    %956 = vmatprep.subr.mxu0 %v500
    %957 = vmatpush1.msra.mxu0 %v499
    %958 = vmatprep.subr.mxu0 0.0
    %959 = vmatpush1.msra.mxu0 0.0
    %960 = vmatprep.subr.mxu0 0.0
    %961 = vmatpush1.msra.mxu0 0.0
    %962 = vmatprep.subr.mxu0 0.0
    %963 = vmatpush1.msra.mxu0 0.0
    %964 = vmatprep.subr.mxu0 0.0
    %965 = vmatpush1.msra.mxu0 0.0
    %966 = vmatprep.subr.mxu0 0.0
    %967 = vmatpush1.msra.mxu0 0.0
    %968 = vmatprep.subr.mxu0 0.0
    %969 = vmatpush1.msra.mxu0 0.0
    %970 = vmatprep.subr.mxu0 0.0
    %971 = vmatpush1.msra.mxu0 0.0
    %972 = vmatprep.subr.mxu0 0.0
    %973 = vmatpush1.msra.mxu0 0.0
    %974 = vmatprep.subr.mxu0 0.0
    %975 = vmatpush1.msra.mxu0 0.0
    %976 = vmatprep.subr.mxu0 0.0
    %977 = vmatpush1.msra.mxu0 0.0
    %978 = vmatprep.subr.mxu0 0.0
    %979 = vmatpush1.msra.mxu0 0.0
    %980 = vmatprep.subr.mxu0 0.0
    %981 = vmatpush1.msra.mxu0 0.0
    %982 = vmatprep.subr.mxu0 0.0
    %983 = vmatpush1.msra.mxu0 0.0
    %984 = vmatprep.subr.mxu0 0.0
    %985 = vmatpush1.msra.mxu0 0.0
    %986 = vmatprep.subr.mxu0 0.0
    %987 = vmatpush1.msra.mxu0 0.0
    %988 = vmatprep.subr.mxu0 0.0
    %989 = vmatpush1.msra.mxu0 0.0
    %990 = vmatprep.mubr.f32.mxu0 0.0
    %991 = vmatmul.mubr.f32.gmra.mrb[0].mxu0 %v850
    %v992 = vpop.f32.mrb[0].mxu0
    %v993 = vadd.f32 0.0, %v992
    %v994 = vpop.f32.mrb[0].mxu0
    %v995 = vadd.f32 0.0, %v994
    %996 = vdwg.mxu0
    %v997 = vadd.f32 %v851, %v922
    %v998 = vadd.f32 %v852, %v924
    %v999 = vadd.f32 %v853, %v993
    %v1000 = vadd.f32 %v854, %v995
    %v1001 = vxor.u32 %v997, 2147483648
    %v1002 = vmul.f32 %v1001, 1.442695
    %v1003 = vpow.pop %v1002
    %v1004 = vadd.f32 %v1003, 1.0
    %v1005 = vrcp.pop %v1004
    %v1006 = vmul.f32 1.0, %v1005
    %v1007 = vxor.u32 %v998, 2147483648
    %v1008 = vmul.f32 %v1007, 1.442695
    %v1009 = vpow.pop %v1008
    %v1010 = vadd.f32 %v1009, 1.0
    %v1011 = vrcp.pop %v1010
    %v1012 = vmul.f32 1.0, %v1011
    %v1013 = vtanh.pop %v999
    %v1014 = vxor.u32 %v1000, 2147483648
    %v1015 = vmul.f32 %v1014, 1.442695
    %v1016 = vpow.pop %v1015
    %v1017 = vadd.f32 %v1016, 1.0
    %v1018 = vrcp.pop %v1017
    %v1019 = vmul.f32 1.0, %v1018
    %v1020 = vmul.f32 %v1012, %v848
    %v1021 = vmul.f32 %v1006, %v1013
    %v1022 = vadd.f32 %v1020, %v1021
    %v1023 = vtanh.pop %v1022
    %v1024 = vmul.f32 %v1019, %v1023
    %v1025 = vld [vmem:[#allocation4 + $0x60] sm:$0xff]
    %v1026 = vld [vmem:[#allocation4 + $0x68] sm:$0xff]
    %v1027 = vld [vmem:[#allocation4 + $0x70] sm:$0xff]
    %v1028 = vld [vmem:[#allocation4 + $0x78] sm:$0xff]
    %1029 = vmatprep.subr.mxu0 %v438
    %1030 = vmatpush1.msra.mxu0 %v437
    %1031 = vmatprep.subr.mxu0 %v442
    %1032 = vmatpush1.msra.mxu0 %v441
    %1033 = vmatprep.subr.mxu0 %v446
    %1034 = vmatpush1.msra.mxu0 %v445
    %1035 = vmatprep.subr.mxu0 %v450
    %1036 = vmatpush1.msra.mxu0 %v449
    %1037 = vmatprep.subr.mxu0 %v454
    %1038 = vmatpush1.msra.mxu0 %v453
    %1039 = vmatprep.subr.mxu0 %v458
    %1040 = vmatpush1.msra.mxu0 %v457
    %1041 = vmatprep.subr.mxu0 %v462
    %1042 = vmatpush1.msra.mxu0 %v461
    %1043 = vmatprep.subr.mxu0 %v466
    %1044 = vmatpush1.msra.mxu0 %v465
    %1045 = vmatprep.subr.mxu0 %v470
    %1046 = vmatpush1.msra.mxu0 %v469
    %1047 = vmatprep.subr.mxu0 %v474
    %1048 = vmatpush1.msra.mxu0 %v473
    %1049 = vmatprep.subr.mxu0 %v478
    %1050 = vmatpush1.msra.mxu0 %v477
    %1051 = vmatprep.subr.mxu0 %v482
    %1052 = vmatpush1.msra.mxu0 %v481
    %1053 = vmatprep.subr.mxu0 %v486
    %1054 = vmatpush1.msra.mxu0 %v485
    %1055 = vmatprep.subr.mxu0 %v490
    %1056 = vmatpush1.msra.mxu0 %v489
    %1057 = vmatprep.subr.mxu0 %v494
    %1058 = vmatpush1.msra.mxu0 %v493
    %1059 = vmatprep.subr.mxu0 %v498
    %1060 = vmatpush1.msra.mxu0 %v497
    %1061 = vmatprep.subr.mxu0 0.0
    %1062 = vmatpush1.msra.mxu0 0.0
    %1063 = vmatprep.subr.mxu0 0.0
    %1064 = vmatpush1.msra.mxu0 0.0
    %1065 = vmatprep.subr.mxu0 0.0
    %1066 = vmatpush1.msra.mxu0 0.0
    %1067 = vmatprep.subr.mxu0 0.0
    %1068 = vmatpush1.msra.mxu0 0.0
    %1069 = vmatprep.subr.mxu0 0.0
    %1070 = vmatpush1.msra.mxu0 0.0
    %1071 = vmatprep.subr.mxu0 0.0
    %1072 = vmatpush1.msra.mxu0 0.0
    %1073 = vmatprep.subr.mxu0 0.0
    %1074 = vmatpush1.msra.mxu0 0.0
    %1075 = vmatprep.subr.mxu0 0.0
    %1076 = vmatpush1.msra.mxu0 0.0
    %1077 = vmatprep.subr.mxu0 0.0
    %1078 = vmatpush1.msra.mxu0 0.0
    %1079 = vmatprep.subr.mxu0 0.0
    %1080 = vmatpush1.msra.mxu0 0.0
    %1081 = vmatprep.subr.mxu0 0.0
    %1082 = vmatpush1.msra.mxu0 0.0
    %1083 = vmatprep.subr.mxu0 0.0
    %1084 = vmatpush1.msra.mxu0 0.0
    %1085 = vmatprep.subr.mxu0 0.0
    %1086 = vmatpush1.msra.mxu0 0.0
    %1087 = vmatprep.subr.mxu0 0.0
    %1088 = vmatpush1.msra.mxu0 0.0
    %1089 = vmatprep.subr.mxu0 0.0
    %1090 = vmatpush1.msra.mxu0 0.0
    %1091 = vmatprep.subr.mxu0 0.0
    %1092 = vmatpush1.msra.mxu0 0.0
    %1093 = vmatprep.mubr.f32.mxu0 0.0
    %1094 = vmatmul.mubr.f32.gmra.mrb[0].mxu0 %v1024
    %v1095 = vpop.f32.mrb[0].mxu0
    %v1096 = vadd.f32 0.0, %v1095
    %v1097 = vpop.f32.mrb[0].mxu0
    %v1098 = vadd.f32 0.0, %v1097
    %1099 = vdwg.mxu0
    %1100 = vmatprep.subr.mxu0 %v440
    %1101 = vmatpush1.msra.mxu0 %v439
    %1102 = vmatprep.subr.mxu0 %v444
    %1103 = vmatpush1.msra.mxu0 %v443
    %1104 = vmatprep.subr.mxu0 %v448
    %1105 = vmatpush1.msra.mxu0 %v447
    %1106 = vmatprep.subr.mxu0 %v452
    %1107 = vmatpush1.msra.mxu0 %v451
    %1108 = vmatprep.subr.mxu0 %v456
    %1109 = vmatpush1.msra.mxu0 %v455
    %1110 = vmatprep.subr.mxu0 %v460
    %1111 = vmatpush1.msra.mxu0 %v459
    %1112 = vmatprep.subr.mxu0 %v464
    %1113 = vmatpush1.msra.mxu0 %v463
    %1114 = vmatprep.subr.mxu0 %v468
    %1115 = vmatpush1.msra.mxu0 %v467
    %1116 = vmatprep.subr.mxu0 %v472
    %1117 = vmatpush1.msra.mxu0 %v471
    %1118 = vmatprep.subr.mxu0 %v476
    %1119 = vmatpush1.msra.mxu0 %v475
    %1120 = vmatprep.subr.mxu0 %v480
    %1121 = vmatpush1.msra.mxu0 %v479
    %1122 = vmatprep.subr.mxu0 %v484
    %1123 = vmatpush1.msra.mxu0 %v483
    %1124 = vmatprep.subr.mxu0 %v488
    %1125 = vmatpush1.msra.mxu0 %v487
    %1126 = vmatprep.subr.mxu0 %v492
    %1127 = vmatpush1.msra.mxu0 %v491
    %1128 = vmatprep.subr.mxu0 %v496
    %1129 = vmatpush1.msra.mxu0 %v495
    %1130 = vmatprep.subr.mxu0 %v500
    %1131 = vmatpush1.msra.mxu0 %v499
    %1132 = vmatprep.subr.mxu0 0.0
    %1133 = vmatpush1.msra.mxu0 0.0
    %1134 = vmatprep.subr.mxu0 0.0
    %1135 = vmatpush1.msra.mxu0 0.0
    %1136 = vmatprep.subr.mxu0 0.0
    %1137 = vmatpush1.msra.mxu0 0.0
    %1138 = vmatprep.subr.mxu0 0.0
    %1139 = vmatpush1.msra.mxu0 0.0
    %1140 = vmatprep.subr.mxu0 0.0
    %1141 = vmatpush1.msra.mxu0 0.0
    %1142 = vmatprep.subr.mxu0 0.0
    %1143 = vmatpush1.msra.mxu0 0.0
    %1144 = vmatprep.subr.mxu0 0.0
    %1145 = vmatpush1.msra.mxu0 0.0
    %1146 = vmatprep.subr.mxu0 0.0
    %1147 = vmatpush1.msra.mxu0 0.0
    %1148 = vmatprep.subr.mxu0 0.0
    %1149 = vmatpush1.msra.mxu0 0.0
    %1150 = vmatprep.subr.mxu0 0.0
    %1151 = vmatpush1.msra.mxu0 0.0
    %1152 = vmatprep.subr.mxu0 0.0
    %1153 = vmatpush1.msra.mxu0 0.0
    %1154 = vmatprep.subr.mxu0 0.0
    %1155 = vmatpush1.msra.mxu0 0.0
    %1156 = vmatprep.subr.mxu0 0.0
    %1157 = vmatpush1.msra.mxu0 0.0
    %1158 = vmatprep.subr.mxu0 0.0
    %1159 = vmatpush1.msra.mxu0 0.0
    %1160 = vmatprep.subr.mxu0 0.0
    %1161 = vmatpush1.msra.mxu0 0.0
    %1162 = vmatprep.subr.mxu0 0.0
    %1163 = vmatpush1.msra.mxu0 0.0
    %1164 = vmatprep.mubr.f32.mxu0 0.0
    %1165 = vmatmul.mubr.f32.gmra.mrb[0].mxu0 %v1024
    %v1166 = vpop.f32.mrb[0].mxu0
    %v1167 = vadd.f32 0.0, %v1166
    %v1168 = vpop.f32.mrb[0].mxu0
    %v1169 = vadd.f32 0.0, %v1168
    %1170 = vdwg.mxu0
    %v1171 = vadd.f32 %v1025, %v1096
    %v1172 = vadd.f32 %v1026, %v1098
    %v1173 = vadd.f32 %v1027, %v1167
    %v1174 = vadd.f32 %v1028, %v1169
    %v1175 = vxor.u32 %v1171, 2147483648
    %v1176 = vmul.f32 %v1175, 1.442695
    %v1177 = vpow.pop %v1176
    %v1178 = vadd.f32 %v1177, 1.0
    %v1179 = vrcp.pop %v1178
    %v1180 = vmul.f32 1.0, %v1179
    %v1181 = vxor.u32 %v1172, 2147483648
    %v1182 = vmul.f32 %v1181, 1.442695
    %v1183 = vpow.pop %v1182
    %v1184 = vadd.f32 %v1183, 1.0
    %v1185 = vrcp.pop %v1184
    %v1186 = vmul.f32 1.0, %v1185
    %v1187 = vtanh.pop %v1173
    %v1188 = vxor.u32 %v1174, 2147483648
    %v1189 = vmul.f32 %v1188, 1.442695
    %v1190 = vpow.pop %v1189
    %v1191 = vadd.f32 %v1190, 1.0
    %v1192 = vrcp.pop %v1191
    %v1193 = vmul.f32 1.0, %v1192
    %v1194 = vmul.f32 %v1186, %v1022
    %v1195 = vmul.f32 %v1180, %v1187
    %v1196 = vadd.f32 %v1194, %v1195
    %v1197 = vtanh.pop %v1196
    %v1198 = vmul.f32 %v1193, %v1197
    %v1199 = vld [vmem:[#allocation4 + $0x80] sm:$0xff]
    %v1200 = vld [vmem:[#allocation4 + $0x88] sm:$0xff]
    %v1201 = vld [vmem:[#allocation4 + $0x90] sm:$0xff]
    %v1202 = vld [vmem:[#allocation4 + $0x98] sm:$0xff]
    %1203 = vmatprep.subr.mxu0 %v438
    %1204 = vmatpush1.msra.mxu0 %v437
    %1205 = vmatprep.subr.mxu0 %v442
    %1206 = vmatpush1.msra.mxu0 %v441
    %1207 = vmatprep.subr.mxu0 %v446
    %1208 = vmatpush1.msra.mxu0 %v445
    %1209 = vmatprep.subr.mxu0 %v450
    %1210 = vmatpush1.msra.mxu0 %v449
    %1211 = vmatprep.subr.mxu0 %v454
    %1212 = vmatpush1.msra.mxu0 %v453
    %1213 = vmatprep.subr.mxu0 %v458
    %1214 = vmatpush1.msra.mxu0 %v457
    %1215 = vmatprep.subr.mxu0 %v462
    %1216 = vmatpush1.msra.mxu0 %v461
    %1217 = vmatprep.subr.mxu0 %v466
    %1218 = vmatpush1.msra.mxu0 %v465
    %1219 = vmatprep.subr.mxu0 %v470
    %1220 = vmatpush1.msra.mxu0 %v469
    %1221 = vmatprep.subr.mxu0 %v474
    %1222 = vmatpush1.msra.mxu0 %v473
    %1223 = vmatprep.subr.mxu0 %v478
    %1224 = vmatpush1.msra.mxu0 %v477
    %1225 = vmatprep.subr.mxu0 %v482
    %1226 = vmatpush1.msra.mxu0 %v481
    %1227 = vmatprep.subr.mxu0 %v486
    %1228 = vmatpush1.msra.mxu0 %v485
    %1229 = vmatprep.subr.mxu0 %v490
    %1230 = vmatpush1.msra.mxu0 %v489
    %1231 = vmatprep.subr.mxu0 %v494
    %1232 = vmatpush1.msra.mxu0 %v493
    %1233 = vmatprep.subr.mxu0 %v498
    %1234 = vmatpush1.msra.mxu0 %v497
    %1235 = vmatprep.subr.mxu0 0.0
    %1236 = vmatpush1.msra.mxu0 0.0
    %1237 = vmatprep.subr.mxu0 0.0
    %1238 = vmatpush1.msra.mxu0 0.0
    %1239 = vmatprep.subr.mxu0 0.0
    %1240 = vmatpush1.msra.mxu0 0.0
    %1241 = vmatprep.subr.mxu0 0.0
    %1242 = vmatpush1.msra.mxu0 0.0
    %1243 = vmatprep.subr.mxu0 0.0
    %1244 = vmatpush1.msra.mxu0 0.0
    %1245 = vmatprep.subr.mxu0 0.0
    %1246 = vmatpush1.msra.mxu0 0.0
    %1247 = vmatprep.subr.mxu0 0.0
    %1248 = vmatpush1.msra.mxu0 0.0
    %1249 = vmatprep.subr.mxu0 0.0
    %1250 = vmatpush1.msra.mxu0 0.0
    %1251 = vmatprep.subr.mxu0 0.0
    %1252 = vmatpush1.msra.mxu0 0.0
    %1253 = vmatprep.subr.mxu0 0.0
    %1254 = vmatpush1.msra.mxu0 0.0
    %1255 = vmatprep.subr.mxu0 0.0
    %1256 = vmatpush1.msra.mxu0 0.0
    %1257 = vmatprep.subr.mxu0 0.0
    %1258 = vmatpush1.msra.mxu0 0.0
    %1259 = vmatprep.subr.mxu0 0.0
    %1260 = vmatpush1.msra.mxu0 0.0
    %1261 = vmatprep.subr.mxu0 0.0
    %1262 = vmatpush1.msra.mxu0 0.0
    %1263 = vmatprep.subr.mxu0 0.0
    %1264 = vmatpush1.msra.mxu0 0.0
    %1265 = vmatprep.subr.mxu0 0.0
    %1266 = vmatpush1.msra.mxu0 0.0
    %1267 = vmatprep.mubr.f32.mxu0 0.0
    %1268 = vmatmul.mubr.f32.gmra.mrb[0].mxu0 %v1198
    %v1269 = vpop.f32.mrb[0].mxu0
    %v1270 = vadd.f32 0.0, %v1269
    %v1271 = vpop.f32.mrb[0].mxu0
    %v1272 = vadd.f32 0.0, %v1271
    %1273 = vdwg.mxu0
    %1274 = vmatprep.subr.mxu0 %v440
    %1275 = vmatpush1.msra.mxu0 %v439
    %1276 = vmatprep.subr.mxu0 %v444
    %1277 = vmatpush1.msra.mxu0 %v443
    %1278 = vmatprep.subr.mxu0 %v448
    %1279 = vmatpush1.msra.mxu0 %v447
    %1280 = vmatprep.subr.mxu0 %v452
    %1281 = vmatpush1.msra.mxu0 %v451
    %1282 = vmatprep.subr.mxu0 %v456
    %1283 = vmatpush1.msra.mxu0 %v455
    %1284 = vmatprep.subr.mxu0 %v460
    %1285 = vmatpush1.msra.mxu0 %v459
    %1286 = vmatprep.subr.mxu0 %v464
    %1287 = vmatpush1.msra.mxu0 %v463
    %1288 = vmatprep.subr.mxu0 %v468
    %1289 = vmatpush1.msra.mxu0 %v467
    %1290 = vmatprep.subr.mxu0 %v472
    %1291 = vmatpush1.msra.mxu0 %v471
    %1292 = vmatprep.subr.mxu0 %v476
    %1293 = vmatpush1.msra.mxu0 %v475
    %1294 = vmatprep.subr.mxu0 %v480
    %1295 = vmatpush1.msra.mxu0 %v479
    %1296 = vmatprep.subr.mxu0 %v484
    %1297 = vmatpush1.msra.mxu0 %v483
    %1298 = vmatprep.subr.mxu0 %v488
    %1299 = vmatpush1.msra.mxu0 %v487
    %1300 = vmatprep.subr.mxu0 %v492
    %1301 = vmatpush1.msra.mxu0 %v491
    %1302 = vmatprep.subr.mxu0 %v496
    %1303 = vmatpush1.msra.mxu0 %v495
    %1304 = vmatprep.subr.mxu0 %v500
    %1305 = vmatpush1.msra.mxu0 %v499
    %1306 = vmatprep.subr.mxu0 0.0
    %1307 = vmatpush1.msra.mxu0 0.0
    %1308 = vmatprep.subr.mxu0 0.0
    %1309 = vmatpush1.msra.mxu0 0.0
    %1310 = vmatprep.subr.mxu0 0.0
    %1311 = vmatpush1.msra.mxu0 0.0
    %1312 = vmatprep.subr.mxu0 0.0
    %1313 = vmatpush1.msra.mxu0 0.0
    %1314 = vmatprep.subr.mxu0 0.0
    %1315 = vmatpush1.msra.mxu0 0.0
    %1316 = vmatprep.subr.mxu0 0.0
    %1317 = vmatpush1.msra.mxu0 0.0
    %1318 = vmatprep.subr.mxu0 0.0
    %1319 = vmatpush1.msra.mxu0 0.0
    %1320 = vmatprep.subr.mxu0 0.0
    %1321 = vmatpush1.msra.mxu0 0.0
    %1322 = vmatprep.subr.mxu0 0.0
    %1323 = vmatpush1.msra.mxu0 0.0
    %1324 = vmatprep.subr.mxu0 0.0
    %1325 = vmatpush1.msra.mxu0 0.0
    %1326 = vmatprep.subr.mxu0 0.0
    %1327 = vmatpush1.msra.mxu0 0.0
    %1328 = vmatprep.subr.mxu0 0.0
    %1329 = vmatpush1.msra.mxu0 0.0
    %1330 = vmatprep.subr.mxu0 0.0
    %1331 = vmatpush1.msra.mxu0 0.0
    %1332 = vmatprep.subr.mxu0 0.0
    %1333 = vmatpush1.msra.mxu0 0.0
    %1334 = vmatprep.subr.mxu0 0.0
    %1335 = vmatpush1.msra.mxu0 0.0
    %1336 = vmatprep.subr.mxu0 0.0
    %1337 = vmatpush1.msra.mxu0 0.0
    %1338 = vmatprep.mubr.f32.mxu0 0.0
    %1339 = vmatmul.mubr.f32.gmra.mrb[0].mxu0 %v1198
    %v1340 = vpop.f32.mrb[0].mxu0
    %v1341 = vadd.f32 0.0, %v1340
    %v1342 = vpop.f32.mrb[0].mxu0
    %v1343 = vadd.f32 0.0, %v1342
    %1344 = vdwg.mxu0
    %v1345 = vadd.f32 %v1199, %v1270
    %v1346 = vadd.f32 %v1200, %v1272
    %v1347 = vadd.f32 %v1201, %v1341
    %v1348 = vadd.f32 %v1202, %v1343
    %v1349 = vxor.u32 %v1345, 2147483648
    %v1350 = vmul.f32 %v1349, 1.442695
    %v1351 = vpow.pop %v1350
    %v1352 = vadd.f32 %v1351, 1.0
    %v1353 = vrcp.pop %v1352
    %v1354 = vmul.f32 1.0, %v1353
    %v1355 = vxor.u32 %v1346, 2147483648
    %v1356 = vmul.f32 %v1355, 1.442695
    %v1357 = vpow.pop %v1356
    %v1358 = vadd.f32 %v1357, 1.0
    %v1359 = vrcp.pop %v1358
    %v1360 = vmul.f32 1.0, %v1359
    %v1361 = vtanh.pop %v1347
    %v1362 = vxor.u32 %v1348, 2147483648
    %v1363 = vmul.f32 %v1362, 1.442695
    %v1364 = vpow.pop %v1363
    %v1365 = vadd.f32 %v1364, 1.0
    %v1366 = vrcp.pop %v1365
    %v1367 = vmul.f32 1.0, %v1366
    %v1368 = vmul.f32 %v1360, %v1196
    %v1369 = vmul.f32 %v1354, %v1361
    %v1370 = vadd.f32 %v1368, %v1369
    %v1371 = vtanh.pop %v1370
    %v1372 = vmul.f32 %v1367, %v1371
    %v1373 = vld [vmem:[#allocation4 + $0xa0] sm:$0xff]
    %v1374 = vld [vmem:[#allocation4 + $0xa8] sm:$0xff]
    %v1375 = vld [vmem:[#allocation4 + $0xb0] sm:$0xff]
    %v1376 = vld [vmem:[#allocation4 + $0xb8] sm:$0xff]
    %1377 = vmatprep.subr.mxu0 %v438
    %1378 = vmatpush1.msra.mxu0 %v437
    %1379 = vmatprep.subr.mxu0 %v442
    %1380 = vmatpush1.msra.mxu0 %v441
    %1381 = vmatprep.subr.mxu0 %v446
    %1382 = vmatpush1.msra.mxu0 %v445
    %1383 = vmatprep.subr.mxu0 %v450
    %1384 = vmatpush1.msra.mxu0 %v449
    %1385 = vmatprep.subr.mxu0 %v454
    %1386 = vmatpush1.msra.mxu0 %v453
    %1387 = vmatprep.subr.mxu0 %v458
    %1388 = vmatpush1.msra.mxu0 %v457
    %1389 = vmatprep.subr.mxu0 %v462
    %1390 = vmatpush1.msra.mxu0 %v461
    %1391 = vmatprep.subr.mxu0 %v466
    %1392 = vmatpush1.msra.mxu0 %v465
    %1393 = vmatprep.subr.mxu0 %v470
    %1394 = vmatpush1.msra.mxu0 %v469
    %1395 = vmatprep.subr.mxu0 %v474
    %1396 = vmatpush1.msra.mxu0 %v473
    %1397 = vmatprep.subr.mxu0 %v478
    %1398 = vmatpush1.msra.mxu0 %v477
    %1399 = vmatprep.subr.mxu0 %v482
    %1400 = vmatpush1.msra.mxu0 %v481
    %1401 = vmatprep.subr.mxu0 %v486
    %1402 = vmatpush1.msra.mxu0 %v485
    %1403 = vmatprep.subr.mxu0 %v490
    %1404 = vmatpush1.msra.mxu0 %v489
    %1405 = vmatprep.subr.mxu0 %v494
    %1406 = vmatpush1.msra.mxu0 %v493
    %1407 = vmatprep.subr.mxu0 %v498
    %1408 = vmatpush1.msra.mxu0 %v497
    %1409 = vmatprep.subr.mxu0 0.0
    %1410 = vmatpush1.msra.mxu0 0.0
    %1411 = vmatprep.subr.mxu0 0.0
    %1412 = vmatpush1.msra.mxu0 0.0
    %1413 = vmatprep.subr.mxu0 0.0
    %1414 = vmatpush1.msra.mxu0 0.0
    %1415 = vmatprep.subr.mxu0 0.0
    %1416 = vmatpush1.msra.mxu0 0.0
    %1417 = vmatprep.subr.mxu0 0.0
    %1418 = vmatpush1.msra.mxu0 0.0
    %1419 = vmatprep.subr.mxu0 0.0
    %1420 = vmatpush1.msra.mxu0 0.0
    %1421 = vmatprep.subr.mxu0 0.0
    %1422 = vmatpush1.msra.mxu0 0.0
    %1423 = vmatprep.subr.mxu0 0.0
    %1424 = vmatpush1.msra.mxu0 0.0
    %1425 = vmatprep.subr.mxu0 0.0
    %1426 = vmatpush1.msra.mxu0 0.0
    %1427 = vmatprep.subr.mxu0 0.0
    %1428 = vmatpush1.msra.mxu0 0.0
    %1429 = vmatprep.subr.mxu0 0.0
    %1430 = vmatpush1.msra.mxu0 0.0
    %1431 = vmatprep.subr.mxu0 0.0
    %1432 = vmatpush1.msra.mxu0 0.0
    %1433 = vmatprep.subr.mxu0 0.0
    %1434 = vmatpush1.msra.mxu0 0.0
    %1435 = vmatprep.subr.mxu0 0.0
    %1436 = vmatpush1.msra.mxu0 0.0
    %1437 = vmatprep.subr.mxu0 0.0
    %1438 = vmatpush1.msra.mxu0 0.0
    %1439 = vmatprep.subr.mxu0 0.0
    %1440 = vmatpush1.msra.mxu0 0.0
    %1441 = vmatprep.mubr.f32.mxu0 0.0
    %1442 = vmatmul.mubr.f32.gmra.mrb[0].mxu0 %v1372
    %v1443 = vpop.f32.mrb[0].mxu0
    %v1444 = vadd.f32 0.0, %v1443
    %v1445 = vpop.f32.mrb[0].mxu0
    %v1446 = vadd.f32 0.0, %v1445
    %1447 = vdwg.mxu0
    %1448 = vmatprep.subr.mxu0 %v440
    %1449 = vmatpush1.msra.mxu0 %v439
    %1450 = vmatprep.subr.mxu0 %v444
    %1451 = vmatpush1.msra.mxu0 %v443
    %1452 = vmatprep.subr.mxu0 %v448
    %1453 = vmatpush1.msra.mxu0 %v447
    %1454 = vmatprep.subr.mxu0 %v452
    %1455 = vmatpush1.msra.mxu0 %v451
    %1456 = vmatprep.subr.mxu0 %v456
    %1457 = vmatpush1.msra.mxu0 %v455
    %1458 = vmatprep.subr.mxu0 %v460
    %1459 = vmatpush1.msra.mxu0 %v459
    %1460 = vmatprep.subr.mxu0 %v464
    %1461 = vmatpush1.msra.mxu0 %v463
    %1462 = vmatprep.subr.mxu0 %v468
    %1463 = vmatpush1.msra.mxu0 %v467
    %1464 = vmatprep.subr.mxu0 %v472
    %1465 = vmatpush1.msra.mxu0 %v471
    %1466 = vmatprep.subr.mxu0 %v476
    %1467 = vmatpush1.msra.mxu0 %v475
    %1468 = vmatprep.subr.mxu0 %v480
    %1469 = vmatpush1.msra.mxu0 %v479
    %1470 = vmatprep.subr.mxu0 %v484
    %1471 = vmatpush1.msra.mxu0 %v483
    %1472 = vmatprep.subr.mxu0 %v488
    %1473 = vmatpush1.msra.mxu0 %v487
    %1474 = vmatprep.subr.mxu0 %v492
    %1475 = vmatpush1.msra.mxu0 %v491
    %1476 = vmatprep.subr.mxu0 %v496
    %1477 = vmatpush1.msra.mxu0 %v495
    %1478 = vmatprep.subr.mxu0 %v500
    %1479 = vmatpush1.msra.mxu0 %v499
    %1480 = vmatprep.subr.mxu0 0.0
    %1481 = vmatpush1.msra.mxu0 0.0
    %1482 = vmatprep.subr.mxu0 0.0
    %1483 = vmatpush1.msra.mxu0 0.0
    %1484 = vmatprep.subr.mxu0 0.0
    %1485 = vmatpush1.msra.mxu0 0.0
    %1486 = vmatprep.subr.mxu0 0.0
    %1487 = vmatpush1.msra.mxu0 0.0
    %1488 = vmatprep.subr.mxu0 0.0
    %1489 = vmatpush1.msra.mxu0 0.0
    %1490 = vmatprep.subr.mxu0 0.0
    %1491 = vmatpush1.msra.mxu0 0.0
    %1492 = vmatprep.subr.mxu0 0.0
    %1493 = vmatpush1.msra.mxu0 0.0
    %1494 = vmatprep.subr.mxu0 0.0
    %1495 = vmatpush1.msra.mxu0 0.0
    %1496 = vmatprep.subr.mxu0 0.0
    %1497 = vmatpush1.msra.mxu0 0.0
    %1498 = vmatprep.subr.mxu0 0.0
    %1499 = vmatpush1.msra.mxu0 0.0
    %1500 = vmatprep.subr.mxu0 0.0
    %1501 = vmatpush1.msra.mxu0 0.0
    %1502 = vmatprep.subr.mxu0 0.0
    %1503 = vmatpush1.msra.mxu0 0.0
    %1504 = vmatprep.subr.mxu0 0.0
    %1505 = vmatpush1.msra.mxu0 0.0
    %1506 = vmatprep.subr.mxu0 0.0
    %1507 = vmatpush1.msra.mxu0 0.0
    %1508 = vmatprep.subr.mxu0 0.0
    %1509 = vmatpush1.msra.mxu0 0.0
    %1510 = vmatprep.subr.mxu0 0.0
    %1511 = vmatpush1.msra.mxu0 0.0
    %1512 = vmatprep.mubr.f32.mxu0 0.0
    %1513 = vmatmul.mubr.f32.gmra.mrb[0].mxu0 %v1372
    %v1514 = vpop.f32.mrb[0].mxu0
    %v1515 = vadd.f32 0.0, %v1514
    %v1516 = vpop.f32.mrb[0].mxu0
    %v1517 = vadd.f32 0.0, %v1516
    %1518 = vdwg.mxu0
    %v1519 = vadd.f32 %v1373, %v1444
    %v1520 = vadd.f32 %v1374, %v1446
    %v1521 = vadd.f32 %v1375, %v1515
    %v1522 = vadd.f32 %v1376, %v1517
    %v1523 = vxor.u32 %v1519, 2147483648
    %v1524 = vmul.f32 %v1523, 1.442695
    %v1525 = vpow.pop %v1524
    %v1526 = vadd.f32 %v1525, 1.0
    %v1527 = vrcp.pop %v1526
    %v1528 = vmul.f32 1.0, %v1527
    %v1529 = vxor.u32 %v1520, 2147483648
    %v1530 = vmul.f32 %v1529, 1.442695
    %v1531 = vpow.pop %v1530
    %v1532 = vadd.f32 %v1531, 1.0
    %v1533 = vrcp.pop %v1532
    %v1534 = vmul.f32 1.0, %v1533
    %v1535 = vtanh.pop %v1521
    %v1536 = vxor.u32 %v1522, 2147483648
    %v1537 = vmul.f32 %v1536, 1.442695
    %v1538 = vpow.pop %v1537
    %v1539 = vadd.f32 %v1538, 1.0
    %v1540 = vrcp.pop %v1539
    %v1541 = vmul.f32 1.0, %v1540
    %v1542 = vmul.f32 %v1534, %v1370
    %v1543 = vmul.f32 %v1528, %v1535
    %v1544 = vadd.f32 %v1542, %v1543
    %v1545 = vtanh.pop %v1544
    %v1546 = vmul.f32 %v1541, %v1545
    %v1547 = vld [vmem:[#allocation4 + $0xc0] sm:$0xff]
    %v1548 = vld [vmem:[#allocation4 + $0xc8] sm:$0xff]
    %v1549 = vld [vmem:[#allocation4 + $0xd0] sm:$0xff]
    %v1550 = vld [vmem:[#allocation4 + $0xd8] sm:$0xff]
    %1551 = vmatprep.subr.mxu0 %v438
    %1552 = vmatpush1.msra.mxu0 %v437
    %1553 = vmatprep.subr.mxu0 %v442
    %1554 = vmatpush1.msra.mxu0 %v441
    %1555 = vmatprep.subr.mxu0 %v446
    %1556 = vmatpush1.msra.mxu0 %v445
    %1557 = vmatprep.subr.mxu0 %v450
    %1558 = vmatpush1.msra.mxu0 %v449
    %1559 = vmatprep.subr.mxu0 %v454
    %1560 = vmatpush1.msra.mxu0 %v453
    %1561 = vmatprep.subr.mxu0 %v458
    %1562 = vmatpush1.msra.mxu0 %v457
    %1563 = vmatprep.subr.mxu0 %v462
    %1564 = vmatpush1.msra.mxu0 %v461
    %1565 = vmatprep.subr.mxu0 %v466
    %1566 = vmatpush1.msra.mxu0 %v465
    %1567 = vmatprep.subr.mxu0 %v470
    %1568 = vmatpush1.msra.mxu0 %v469
    %1569 = vmatprep.subr.mxu0 %v474
    %1570 = vmatpush1.msra.mxu0 %v473
    %1571 = vmatprep.subr.mxu0 %v478
    %1572 = vmatpush1.msra.mxu0 %v477
    %1573 = vmatprep.subr.mxu0 %v482
    %1574 = vmatpush1.msra.mxu0 %v481
    %1575 = vmatprep.subr.mxu0 %v486
    %1576 = vmatpush1.msra.mxu0 %v485
    %1577 = vmatprep.subr.mxu0 %v490
    %1578 = vmatpush1.msra.mxu0 %v489
    %1579 = vmatprep.subr.mxu0 %v494
    %1580 = vmatpush1.msra.mxu0 %v493
    %1581 = vmatprep.subr.mxu0 %v498
    %1582 = vmatpush1.msra.mxu0 %v497
    %1583 = vmatprep.subr.mxu0 0.0
    %1584 = vmatpush1.msra.mxu0 0.0
    %1585 = vmatprep.subr.mxu0 0.0
    %1586 = vmatpush1.msra.mxu0 0.0
    %1587 = vmatprep.subr.mxu0 0.0
    %1588 = vmatpush1.msra.mxu0 0.0
    %1589 = vmatprep.subr.mxu0 0.0
    %1590 = vmatpush1.msra.mxu0 0.0
    %1591 = vmatprep.subr.mxu0 0.0
    %1592 = vmatpush1.msra.mxu0 0.0
    %1593 = vmatprep.subr.mxu0 0.0
    %1594 = vmatpush1.msra.mxu0 0.0
    %1595 = vmatprep.subr.mxu0 0.0
    %1596 = vmatpush1.msra.mxu0 0.0
    %1597 = vmatprep.subr.mxu0 0.0
    %1598 = vmatpush1.msra.mxu0 0.0
    %1599 = vmatprep.subr.mxu0 0.0
    %1600 = vmatpush1.msra.mxu0 0.0
    %1601 = vmatprep.subr.mxu0 0.0
    %1602 = vmatpush1.msra.mxu0 0.0
    %1603 = vmatprep.subr.mxu0 0.0
    %1604 = vmatpush1.msra.mxu0 0.0
    %1605 = vmatprep.subr.mxu0 0.0
    %1606 = vmatpush1.msra.mxu0 0.0
    %1607 = vmatprep.subr.mxu0 0.0
    %1608 = vmatpush1.msra.mxu0 0.0
    %1609 = vmatprep.subr.mxu0 0.0
    %1610 = vmatpush1.msra.mxu0 0.0
    %1611 = vmatprep.subr.mxu0 0.0
    %1612 = vmatpush1.msra.mxu0 0.0
    %1613 = vmatprep.subr.mxu0 0.0
    %1614 = vmatpush1.msra.mxu0 0.0
    %1615 = vmatprep.mubr.f32.mxu0 0.0
    %1616 = vmatmul.mubr.f32.gmra.mrb[0].mxu0 %v1546
    %v1617 = vpop.f32.mrb[0].mxu0
    %v1618 = vadd.f32 0.0, %v1617
    %v1619 = vpop.f32.mrb[0].mxu0
    %v1620 = vadd.f32 0.0, %v1619
    %1621 = vdwg.mxu0
    %1622 = vmatprep.subr.mxu0 %v440
    %1623 = vmatpush1.msra.mxu0 %v439
    %1624 = vmatprep.subr.mxu0 %v444
    %1625 = vmatpush1.msra.mxu0 %v443
    %1626 = vmatprep.subr.mxu0 %v448
    %1627 = vmatpush1.msra.mxu0 %v447
    %1628 = vmatprep.subr.mxu0 %v452
    %1629 = vmatpush1.msra.mxu0 %v451
    %1630 = vmatprep.subr.mxu0 %v456
    %1631 = vmatpush1.msra.mxu0 %v455
    %1632 = vmatprep.subr.mxu0 %v460
    %1633 = vmatpush1.msra.mxu0 %v459
    %1634 = vmatprep.subr.mxu0 %v464
    %1635 = vmatpush1.msra.mxu0 %v463
    %1636 = vmatprep.subr.mxu0 %v468
    %1637 = vmatpush1.msra.mxu0 %v467
    %1638 = vmatprep.subr.mxu0 %v472
    %1639 = vmatpush1.msra.mxu0 %v471
    %1640 = vmatprep.subr.mxu0 %v476
    %1641 = vmatpush1.msra.mxu0 %v475
    %1642 = vmatprep.subr.mxu0 %v480
    %1643 = vmatpush1.msra.mxu0 %v479
    %1644 = vmatprep.subr.mxu0 %v484
    %1645 = vmatpush1.msra.mxu0 %v483
    %1646 = vmatprep.subr.mxu0 %v488
    %1647 = vmatpush1.msra.mxu0 %v487
    %1648 = vmatprep.subr.mxu0 %v492
    %1649 = vmatpush1.msra.mxu0 %v491
    %1650 = vmatprep.subr.mxu0 %v496
    %1651 = vmatpush1.msra.mxu0 %v495
    %1652 = vmatprep.subr.mxu0 %v500
    %1653 = vmatpush1.msra.mxu0 %v499
    %1654 = vmatprep.subr.mxu0 0.0
    %1655 = vmatpush1.msra.mxu0 0.0
    %1656 = vmatprep.subr.mxu0 0.0
    %1657 = vmatpush1.msra.mxu0 0.0
    %1658 = vmatprep.subr.mxu0 0.0
    %1659 = vmatpush1.msra.mxu0 0.0
    %1660 = vmatprep.subr.mxu0 0.0
    %1661 = vmatpush1.msra.mxu0 0.0
    %1662 = vmatprep.subr.mxu0 0.0
    %1663 = vmatpush1.msra.mxu0 0.0
    %1664 = vmatprep.subr.mxu0 0.0
    %1665 = vmatpush1.msra.mxu0 0.0
    %1666 = vmatprep.subr.mxu0 0.0
    %1667 = vmatpush1.msra.mxu0 0.0
    %1668 = vmatprep.subr.mxu0 0.0
    %1669 = vmatpush1.msra.mxu0 0.0
    %1670 = vmatprep.subr.mxu0 0.0
    %1671 = vmatpush1.msra.mxu0 0.0
    %1672 = vmatprep.subr.mxu0 0.0
    %1673 = vmatpush1.msra.mxu0 0.0
    %1674 = vmatprep.subr.mxu0 0.0
    %1675 = vmatpush1.msra.mxu0 0.0
    %1676 = vmatprep.subr.mxu0 0.0
    %1677 = vmatpush1.msra.mxu0 0.0
    %1678 = vmatprep.subr.mxu0 0.0
    %1679 = vmatpush1.msra.mxu0 0.0
    %1680 = vmatprep.subr.mxu0 0.0
    %1681 = vmatpush1.msra.mxu0 0.0
    %1682 = vmatprep.subr.mxu0 0.0
    %1683 = vmatpush1.msra.mxu0 0.0
    %1684 = vmatprep.subr.mxu0 0.0
    %1685 = vmatpush1.msra.mxu0 0.0
    %1686 = vmatprep.mubr.f32.mxu0 0.0
    %1687 = vmatmul.mubr.f32.gmra.mrb[0].mxu0 %v1546
    %v1688 = vpop.f32.mrb[0].mxu0
    %v1689 = vadd.f32 0.0, %v1688
    %v1690 = vpop.f32.mrb[0].mxu0
    %v1691 = vadd.f32 0.0, %v1690
    %1692 = vdwg.mxu0
    %v1693 = vadd.f32 %v1547, %v1618
    %v1694 = vadd.f32 %v1548, %v1620
    %v1695 = vadd.f32 %v1549, %v1689
    %v1696 = vadd.f32 %v1550, %v1691
    %v1697 = vxor.u32 %v1693, 2147483648
    %v1698 = vmul.f32 %v1697, 1.442695
    %v1699 = vpow.pop %v1698
    %v1700 = vadd.f32 %v1699, 1.0
    %v1701 = vrcp.pop %v1700
    %v1702 = vmul.f32 1.0, %v1701
    %v1703 = vxor.u32 %v1694, 2147483648
    %v1704 = vmul.f32 %v1703, 1.442695
    %v1705 = vpow.pop %v1704
    %v1706 = vadd.f32 %v1705, 1.0
    %v1707 = vrcp.pop %v1706
    %v1708 = vmul.f32 1.0, %v1707
    %v1709 = vtanh.pop %v1695
    %v1710 = vxor.u32 %v1696, 2147483648
    %v1711 = vmul.f32 %v1710, 1.442695
    %v1712 = vpow.pop %v1711
    %v1713 = vadd.f32 %v1712, 1.0
    %v1714 = vrcp.pop %v1713
    %v1715 = vmul.f32 1.0, %v1714
    %v1716 = vmul.f32 %v1708, %v1544
    %v1717 = vmul.f32 %v1702, %v1709
    %v1718 = vadd.f32 %v1716, %v1717
    %v1719 = vtanh.pop %v1718
    %v1720 = vmul.f32 %v1715, %v1719
    %v1721 = vld [vmem:[#allocation4 + $0xe0] sm:$0xff]
    %v1722 = vld [vmem:[#allocation4 + $0xe8] sm:$0xff]
    %v1723 = vld [vmem:[#allocation4 + $0xf0] sm:$0xff]
    %v1724 = vld [vmem:[#allocation4 + $0xf8] sm:$0xff]
    %1725 = vmatprep.subr.mxu0 %v438
    %1726 = vmatpush1.msra.mxu0 %v437
    %1727 = vmatprep.subr.mxu0 %v442
    %1728 = vmatpush1.msra.mxu0 %v441
    %1729 = vmatprep.subr.mxu0 %v446
    %1730 = vmatpush1.msra.mxu0 %v445
    %1731 = vmatprep.subr.mxu0 %v450
    %1732 = vmatpush1.msra.mxu0 %v449
    %1733 = vmatprep.subr.mxu0 %v454
    %1734 = vmatpush1.msra.mxu0 %v453
    %1735 = vmatprep.subr.mxu0 %v458
    %1736 = vmatpush1.msra.mxu0 %v457
    %1737 = vmatprep.subr.mxu0 %v462
    %1738 = vmatpush1.msra.mxu0 %v461
    %1739 = vmatprep.subr.mxu0 %v466
    %1740 = vmatpush1.msra.mxu0 %v465
    %1741 = vmatprep.subr.mxu0 %v470
    %1742 = vmatpush1.msra.mxu0 %v469
    %1743 = vmatprep.subr.mxu0 %v474
    %1744 = vmatpush1.msra.mxu0 %v473
    %1745 = vmatprep.subr.mxu0 %v478
    %1746 = vmatpush1.msra.mxu0 %v477
    %1747 = vmatprep.subr.mxu0 %v482
    %1748 = vmatpush1.msra.mxu0 %v481
    %1749 = vmatprep.subr.mxu0 %v486
    %1750 = vmatpush1.msra.mxu0 %v485
    %1751 = vmatprep.subr.mxu0 %v490
    %1752 = vmatpush1.msra.mxu0 %v489
    %1753 = vmatprep.subr.mxu0 %v494
    %1754 = vmatpush1.msra.mxu0 %v493
    %1755 = vmatprep.subr.mxu0 %v498
    %1756 = vmatpush1.msra.mxu0 %v497
    %1757 = vmatprep.subr.mxu0 0.0
    %1758 = vmatpush1.msra.mxu0 0.0
    %1759 = vmatprep.subr.mxu0 0.0
    %1760 = vmatpush1.msra.mxu0 0.0
    %1761 = vmatprep.subr.mxu0 0.0
    %1762 = vmatpush1.msra.mxu0 0.0
    %1763 = vmatprep.subr.mxu0 0.0
    %1764 = vmatpush1.msra.mxu0 0.0
    %1765 = vmatprep.subr.mxu0 0.0
    %1766 = vmatpush1.msra.mxu0 0.0
    %1767 = vmatprep.subr.mxu0 0.0
    %1768 = vmatpush1.msra.mxu0 0.0
    %1769 = vmatprep.subr.mxu0 0.0
    %1770 = vmatpush1.msra.mxu0 0.0
    %1771 = vmatprep.subr.mxu0 0.0
    %1772 = vmatpush1.msra.mxu0 0.0
    %1773 = vmatprep.subr.mxu0 0.0
    %1774 = vmatpush1.msra.mxu0 0.0
    %1775 = vmatprep.subr.mxu0 0.0
    %1776 = vmatpush1.msra.mxu0 0.0
    %1777 = vmatprep.subr.mxu0 0.0
    %1778 = vmatpush1.msra.mxu0 0.0
    %1779 = vmatprep.subr.mxu0 0.0
    %1780 = vmatpush1.msra.mxu0 0.0
    %1781 = vmatprep.subr.mxu0 0.0
    %1782 = vmatpush1.msra.mxu0 0.0
    %1783 = vmatprep.subr.mxu0 0.0
    %1784 = vmatpush1.msra.mxu0 0.0
    %1785 = vmatprep.subr.mxu0 0.0
    %1786 = vmatpush1.msra.mxu0 0.0
    %1787 = vmatprep.subr.mxu0 0.0
    %1788 = vmatpush1.msra.mxu0 0.0
    %1789 = vmatprep.mubr.f32.mxu0 0.0
    %1790 = vmatmul.mubr.f32.gmra.mrb[0].mxu0 %v1720
    %v1791 = vpop.f32.mrb[0].mxu0
    %v1792 = vadd.f32 0.0, %v1791
    %v1793 = vpop.f32.mrb[0].mxu0
    %v1794 = vadd.f32 0.0, %v1793
    %1795 = vdwg.mxu0
    %1796 = vmatprep.subr.mxu0 %v440
    %1797 = vmatpush1.msra.mxu0 %v439
    %1798 = vmatprep.subr.mxu0 %v444
    %1799 = vmatpush1.msra.mxu0 %v443
    %1800 = vmatprep.subr.mxu0 %v448
    %1801 = vmatpush1.msra.mxu0 %v447
    %1802 = vmatprep.subr.mxu0 %v452
    %1803 = vmatpush1.msra.mxu0 %v451
    %1804 = vmatprep.subr.mxu0 %v456
    %1805 = vmatpush1.msra.mxu0 %v455
    %1806 = vmatprep.subr.mxu0 %v460
    %1807 = vmatpush1.msra.mxu0 %v459
    %1808 = vmatprep.subr.mxu0 %v464
    %1809 = vmatpush1.msra.mxu0 %v463
    %1810 = vmatprep.subr.mxu0 %v468
    %1811 = vmatpush1.msra.mxu0 %v467
    %1812 = vmatprep.subr.mxu0 %v472
    %1813 = vmatpush1.msra.mxu0 %v471
    %1814 = vmatprep.subr.mxu0 %v476
    %1815 = vmatpush1.msra.mxu0 %v475
    %1816 = vmatprep.subr.mxu0 %v480
    %1817 = vmatpush1.msra.mxu0 %v479
    %1818 = vmatprep.subr.mxu0 %v484
    %1819 = vmatpush1.msra.mxu0 %v483
    %1820 = vmatprep.subr.mxu0 %v488
    %1821 = vmatpush1.msra.mxu0 %v487
    %1822 = vmatprep.subr.mxu0 %v492
    %1823 = vmatpush1.msra.mxu0 %v491
    %1824 = vmatprep.subr.mxu0 %v496
    %1825 = vmatpush1.msra.mxu0 %v495
    %1826 = vmatprep.subr.mxu0 %v500
    %1827 = vmatpush1.msra.mxu0 %v499
    %1828 = vmatprep.subr.mxu0 0.0
    %1829 = vmatpush1.msra.mxu0 0.0
    %1830 = vmatprep.subr.mxu0 0.0
    %1831 = vmatpush1.msra.mxu0 0.0
    %1832 = vmatprep.subr.mxu0 0.0
    %1833 = vmatpush1.msra.mxu0 0.0
    %1834 = vmatprep.subr.mxu0 0.0
    %1835 = vmatpush1.msra.mxu0 0.0
    %1836 = vmatprep.subr.mxu0 0.0
    %1837 = vmatpush1.msra.mxu0 0.0
    %1838 = vmatprep.subr.mxu0 0.0
    %1839 = vmatpush1.msra.mxu0 0.0
    %1840 = vmatprep.subr.mxu0 0.0
    %1841 = vmatpush1.msra.mxu0 0.0
    %1842 = vmatprep.subr.mxu0 0.0
    %1843 = vmatpush1.msra.mxu0 0.0
    %1844 = vmatprep.subr.mxu0 0.0
    %1845 = vmatpush1.msra.mxu0 0.0
    %1846 = vmatprep.subr.mxu0 0.0
    %1847 = vmatpush1.msra.mxu0 0.0
    %1848 = vmatprep.subr.mxu0 0.0
    %1849 = vmatpush1.msra.mxu0 0.0
    %1850 = vmatprep.subr.mxu0 0.0
    %1851 = vmatpush1.msra.mxu0 0.0
    %1852 = vmatprep.subr.mxu0 0.0
    %1853 = vmatpush1.msra.mxu0 0.0
    %1854 = vmatprep.subr.mxu0 0.0
    %1855 = vmatpush1.msra.mxu0 0.0
    %1856 = vmatprep.subr.mxu0 0.0
    %1857 = vmatpush1.msra.mxu0 0.0
    %1858 = vmatprep.subr.mxu0 0.0
    %1859 = vmatpush1.msra.mxu0 0.0
    %1860 = vmatprep.mubr.f32.mxu0 0.0
    %1861 = vmatmul.mubr.f32.gmra.mrb[0].mxu0 %v1720
    %v1862 = vpop.f32.mrb[0].mxu0
    %v1863 = vadd.f32 0.0, %v1862
    %v1864 = vpop.f32.mrb[0].mxu0
    %v1865 = vadd.f32 0.0, %v1864
    %1866 = vdwg.mxu0
    %v1867 = vadd.f32 %v1721, %v1792
    %v1868 = vadd.f32 %v1722, %v1794
    %v1869 = vadd.f32 %v1723, %v1863
    %v1870 = vadd.f32 %v1724, %v1865
    %v1871 = vxor.u32 %v1867, 2147483648
    %v1872 = vmul.f32 %v1871, 1.442695
    %v1873 = vpow.pop %v1872
    %v1874 = vadd.f32 %v1873, 1.0
    %v1875 = vrcp.pop %v1874
    %v1876 = vmul.f32 1.0, %v1875
    %v1877 = vxor.u32 %v1868, 2147483648
    %v1878 = vmul.f32 %v1877, 1.442695
    %v1879 = vpow.pop %v1878
    %v1880 = vadd.f32 %v1879, 1.0
    %v1881 = vrcp.pop %v1880
    %v1882 = vmul.f32 1.0, %v1881
    %v1883 = vtanh.pop %v1869
    %v1884 = vxor.u32 %v1870, 2147483648
    %v1885 = vmul.f32 %v1884, 1.442695
    %v1886 = vpow.pop %v1885
    %v1887 = vadd.f32 %v1886, 1.0
    %v1888 = vrcp.pop %v1887
    %v1889 = vmul.f32 1.0, %v1888
    %v1890 = vmul.f32 %v1882, %v1718
    %v1891 = vmul.f32 %v1876, %v1883
    %v1892 = vadd.f32 %v1890, %v1891
    %v1893 = vtanh.pop %v1892
    %v1894 = vmul.f32 %v1889, %v1893
    %1895 = vst [vmem:[#allocation2] sm:$0xff] %v1894
    %1896 = vst [vmem:[#allocation3] sm:$0xff] %v1892
    // Predicated region
    $region46: #{tpu_custom_call.1} parent=1 // pred_check
      %p1897 = pneg %p79
    $region47: #{tpu_custom_call.1} parent=1 // pred_check_branch
      %1899 = sbr.rel (%p1897) target = $region49
    $region48: #{tpu_custom_call.1} parent=1 // pred_region
      %v1900 = vld [vmem:[#allocation11] sm:$0xff]
      %v1901 = vld [vmem:[#allocation11 + $0x8] sm:$0xff]
      %v1902 = vld [vmem:[#allocation11 + $0x10] sm:$0xff]
      %v1903 = vld [vmem:[#allocation11 + $0x18] sm:$0xff]
      %v1904 = vld [vmem:[#allocation11 + $0x20] sm:$0xff]
      %v1905 = vld [vmem:[#allocation11 + $0x28] sm:$0xff]
      %v1906 = vld [vmem:[#allocation11 + $0x30] sm:$0xff]
      %v1907 = vld [vmem:[#allocation11 + $0x38] sm:$0xff]
      %v1908 = vld [vmem:[#allocation11 + $0x40] sm:$0xff]
      %v1909 = vld [vmem:[#allocation11 + $0x48] sm:$0xff]
      %v1910 = vld [vmem:[#allocation11 + $0x50] sm:$0xff]
      %v1911 = vld [vmem:[#allocation11 + $0x58] sm:$0xff]
      %v1912 = vld [vmem:[#allocation11 + $0x60] sm:$0xff]
      %v1913 = vld [vmem:[#allocation11 + $0x68] sm:$0xff]
      %v1914 = vld [vmem:[#allocation11 + $0x70] sm:$0xff]
      %v1915 = vld [vmem:[#allocation11 + $0x78] sm:$0xff]
      %v1916 = vld [vmem:[%s5] sm:$0x1]
      %v1918 = vlaneseq
      %v1919 = vshrl.u32 %v1918, 7
      %v1920 = vsub.s32 0, %v1919
      %v1921 = vrot.slane %v1916, %v1920
      %1923 = vmatprep.subr.mxu0 0.0
      %1924 = vmatpush1.msra.mxu0 %v1900
      %1925 = vmatprep.subr.mxu0 0.0
      %1926 = vmatpush1.msra.mxu0 %v1901
      %1927 = vmatprep.subr.mxu0 0.0
      %1928 = vmatpush1.msra.mxu0 %v1902
      %1929 = vmatprep.subr.mxu0 0.0
      %1930 = vmatpush1.msra.mxu0 %v1903
      %1931 = vmatprep.subr.mxu0 0.0
      %1932 = vmatpush1.msra.mxu0 %v1904
      %1933 = vmatprep.subr.mxu0 0.0
      %1934 = vmatpush1.msra.mxu0 %v1905
      %1935 = vmatprep.subr.mxu0 0.0
      %1936 = vmatpush1.msra.mxu0 %v1906
      %1937 = vmatprep.subr.mxu0 0.0
      %1938 = vmatpush1.msra.mxu0 %v1907
      %1939 = vmatprep.subr.mxu0 0.0
      %1940 = vmatpush1.msra.mxu0 %v1908
      %1941 = vmatprep.subr.mxu0 0.0
      %1942 = vmatpush1.msra.mxu0 %v1909
      %1943 = vmatprep.subr.mxu0 0.0
      %1944 = vmatpush1.msra.mxu0 %v1910
      %1945 = vmatprep.subr.mxu0 0.0
      %1946 = vmatpush1.msra.mxu0 %v1911
      %1947 = vmatprep.subr.mxu0 0.0
      %1948 = vmatpush1.msra.mxu0 %v1912
      %1949 = vmatprep.subr.mxu0 0.0
      %1950 = vmatpush1.msra.mxu0 %v1913
      %1951 = vmatprep.subr.mxu0 0.0
      %1952 = vmatpush1.msra.mxu0 %v1914
      %1953 = vmatprep.subr.mxu0 0.0
      %1954 = vmatpush1.msra.mxu0 %v1915
      %1955 = vmatprep.subr.mxu0 0.0
      %1956 = vmatpush1.msra.mxu0 0.0
      %1957 = vmatprep.subr.mxu0 0.0
      %1958 = vmatpush1.msra.mxu0 0.0
      %1959 = vmatprep.subr.mxu0 0.0
      %1960 = vmatpush1.msra.mxu0 0.0
      %1961 = vmatprep.subr.mxu0 0.0
      %1962 = vmatpush1.msra.mxu0 0.0
      %1963 = vmatprep.subr.mxu0 0.0
      %1964 = vmatpush1.msra.mxu0 0.0
      %1965 = vmatprep.subr.mxu0 0.0
      %1966 = vmatpush1.msra.mxu0 0.0
      %1967 = vmatprep.subr.mxu0 0.0
      %1968 = vmatpush1.msra.mxu0 0.0
      %1969 = vmatprep.subr.mxu0 0.0
      %1970 = vmatpush1.msra.mxu0 0.0
      %1971 = vmatprep.subr.mxu0 0.0
      %1972 = vmatpush1.msra.mxu0 0.0
      %1973 = vmatprep.subr.mxu0 0.0
      %1974 = vmatpush1.msra.mxu0 0.0
      %1975 = vmatprep.subr.mxu0 0.0
      %1976 = vmatpush1.msra.mxu0 0.0
      %1977 = vmatprep.subr.mxu0 0.0
      %1978 = vmatpush1.msra.mxu0 0.0
      %1979 = vmatprep.subr.mxu0 0.0
      %1980 = vmatpush1.msra.mxu0 0.0
      %1981 = vmatprep.subr.mxu0 0.0
      %1982 = vmatpush1.msra.mxu0 0.0
      %1983 = vmatprep.subr.mxu0 0.0
      %1984 = vmatpush1.msra.mxu0 0.0
      %1985 = vmatprep.subr.mxu0 0.0
      %1986 = vmatpush1.msra.mxu0 0.0
      %1987 = vmatprep.mubr.f32.mxu0 0.0
      %1988 = vmatmul.mubr.f32.gmra.mrb[0].mxu0 %v1894
      %v1989 = vpop.f32.mrb[0].mxu0
      %v1990 = vadd.f32 %v1921, %v1989
      %v1991 = vpop.f32.mrb[0].mxu0
      %1992 = vdwg.mxu0
      %1993 = vst [vmem:[#allocation13] sm:$0xff] %v1990
    $region49: #{tpu_custom_call.1} parent=1 // pred_fallthru
      _
    // Predicated region
    $region50: #{tpu_custom_call.1} parent=1 // pred_check
      _
    $region51: #{tpu_custom_call.1} parent=1 // pred_check_branch
      %1995 = sbr.rel (0) target = $region53
    $region52: #{tpu_custom_call.1} parent=1 // pred_region
      %s1997 = ssub.s32 128, 128
      %1998 = vsyncadd [#allocation7], %s1997
      %s2000 = sshll.u32 [#allocation13], 4
      %s2001 = int_to_ptr.vmem [resolvable:$true] %s2000
      %2003 = dma.vmem_to_hbm [thread:$0]  %s2001, 128, %s6, [#allocation7]
    $region53: #{tpu_custom_call.1} parent=1 // pred_fallthru
      _
    // Predicated region
    $region54: #{tpu_custom_call.1} parent=1 // pred_check
      _
    $region55: #{tpu_custom_call.1} parent=1 // pred_check_branch
      %2005 = sbr.rel (0) target = $region57
    $region56: #{tpu_custom_call.1} parent=1 // pred_region
      %2006 = dma.done [#allocation7], 128
    $region57: #{tpu_custom_call.1} parent=1 // pred_fallthru
      _
    %2007 = vsyncpa [#allocation6], 1
    %2008 = vsyncpa [#allocation9], 1
    %2009 = vsyncpa [#allocation12], 1
    %2010 = vsyncpa [#allocation7], 1

</llo_original>
